<compile_context>
chip_gen: v7x
topology: tpu7x:2x2x1
jax: 0.10.0
libtpu: 0.0.40
codegen_flags: <defaults>
</compile_context>

<pallas_src>
import functools

import jax
import jax.numpy as jnp
from jax.experimental import pallas as pl
from jax.experimental.pallas import tpu as pltpu


def _round_up(x, m):
    return (x + m - 1) // m * m


def _probe_copy_kernel(x_ref, o_ref):
    o_ref[...] = x_ref[...]


@functools.lru_cache(maxsize=None)
def _single_buffer_supported():
    """Probe once whether BlockSpec(pipeline_mode=pl.Buffered(1)) lowers on the
    running JAX/Mosaic; used to single-buffer grid-invariant inputs."""
    if not hasattr(pl, "Buffered"):
        return False
    try:
        with jax.ensure_compile_time_eval():   # run eagerly even if probed under jit trace
            spec = pl.BlockSpec((8, 128), lambda i: (0, 0), pipeline_mode=pl.Buffered(1))
            out = pl.pallas_call(
                _probe_copy_kernel,
                out_shape=jax.ShapeDtypeStruct((8, 128), jnp.float32),
                grid=(2,),
                in_specs=[spec],
                out_specs=pl.BlockSpec((8, 128), lambda i: (0, 0)),
            )(jnp.zeros((8, 128), jnp.float32))
            jax.block_until_ready(out)
        return True
    except Exception:   # any failure -> fall back to default double buffering
        return False


def _invariant_spec(shape, index_map):
    """BlockSpec for a grid-(mostly-)invariant input: single-buffered when the
    running JAX supports per-spec pipeline_mode, else the default spec."""
    if _single_buffer_supported():
        return pl.BlockSpec(shape, index_map, pipeline_mode=pl.Buffered(1))
    return pl.BlockSpec(shape, index_map)


def _pick_conv_row_tile(Ho, Wo, Wp, Cin_p, Cout_p, Cout, stride,
                        budget_bytes=12 * 1024 * 1024):
    """Largest output-row tile (multiple of 8 dividing Ho, capped at 128) whose
    pass-1 per-step working set fits `budget_bytes`; prefer >= 2 tiles so the
    row axis pipelines and can shard across v7x's two TensorCores."""
    def step_bytes(th):
        nrows = (th - 1) * stride + 3
        xwin = nrows * Wp * Cin_p * 2                              # bf16 tap window
        patch = th * Wo * (9 if Cin_p % 128 == 0 else 1) * Cin_p * 2
        acc = th * Wo * Cout_p * 4                                 # f32 MXU accumulator
        out = th * Wo * Cout * 2 * 2 + 2 * Cout_p * 4 * 2          # bf16 conv tile + stats (x2 buf)
        return xwin + patch + acc + out

    cands = [t for t in (128, 64, 32, 16, 8)
             if Ho % t == 0 and step_bytes(t) <= budget_bytes]
    for t in cands:
        if Ho // t >= 2:
            return t
    if cands:
        return cands[0]
    return Ho                                                      # tiny / odd heights


def _pick_bn_row_tile(N, Ho, Wo, Cout, budget_bytes=16 * 1024 * 1024):
    """Pass 2 is pure mem-bound: largest row slab that fits VMEM, while keeping
    at least 2 grid steps overall so v7x's two TensorCores both get work."""
    per_row = Wo * Cout * (2 + 4) * 2            # bf16 in + f32 out, double buffered
    cands = [Ho] + [t for t in (256, 128, 64, 32, 16, 8) if t < Ho and Ho % t == 0]
    fits = [t for t in cands if t * per_row <= budget_bytes] or [min(cands)]
    th2 = fits[0]
    if N * (Ho // th2) < 2:
        for t in fits:
            if N * (Ho // t) >= 2:
                return t
    return th2


# ---------------------------------------------------------------------------
# pass 1: conv tile (MXU) + BN partial statistics
# ---------------------------------------------------------------------------
def _conv_stats_kernel(x_ref, w_ref, conv_ref, stats_ref, *, TH, Wo, Cout, stride):
    """
    x_ref    : (1, H+2, W+2, Cin_p)  bf16  whole padded image (resident across r)
    w_ref    : (9*Cin_p, Cout_p)     bf16  HWIO weights, taps flattened on K
    conv_ref : (1, TH, Wo, Cout)     bf16  conv output tile (channel-cropped)
    stats_ref: (1, 1, 2, Cout_p)     f32   [sum, sum_sq] for this tile
    """
    r = pl.program_id(1)
    cin_p = x_ref.shape[3]
    cout_p = w_ref.shape[1]

    # padded-input rows feeding this tile of TH output rows
    nrows = (TH - 1) * stride + 3
    row0 = r * (TH * stride)
    if (TH * stride) % 8 == 0:
        row0 = pl.multiple_of(row0, 8)
    xwin = x_ref[0, pl.ds(row0, nrows), :, :]                 # (nrows, W+2, Cin_p)

    def tap(ky, kx):
        if stride == 1:
            t = xwin[ky:ky + TH, kx:kx + Wo, :]
        else:
            # TODO(synk): replace strided sublane slicing with a reshape-based
            # (Wo, stride) width split to avoid per-tap XLU gathers for stride>1.
            t = xwin[ky::stride, kx::stride, :][:TH, :Wo, :]
        return t.reshape(TH * Wo, cin_p)

    if cin_p % 128 == 0:
        # lane-dense taps: concat is pure vreg stacking -> one K = 9*Cin matmul
        patch = jnp.concatenate([tap(ky, kx) for ky in range(3) for kx in range(3)],
                                axis=-1)
        acc = jnp.dot(patch, w_ref[...], preferred_element_type=jnp.float32)
    else:
        # narrow Cin: a 9*Cin concat would lane-pack through the XLU and
        # materialize a large copy; use 9 accumulating K=Cin matmuls instead.
        acc = jnp.zeros((TH * Wo, cout_p), jnp.float32)
        for idx in range(9):
            ky, kx = divmod(idx, 3)
            w_tap = w_ref[idx * cin_p:(idx + 1) * cin_p, :]
            acc = acc + jnp.dot(tap(ky, kx), w_tap, preferred_element_type=jnp.float32)

    # single-pass BN partial stats from the f32 accumulator (lane-dense Cout_p)
    stats_ref[:, :, 0:1, :] = jnp.sum(acc, axis=0).reshape(1, 1, 1, cout_p)
    stats_ref[:, :, 1:2, :] = jnp.sum(acc * acc, axis=0).reshape(1, 1, 1, cout_p)

    # conv intermediate: crop channel padding, store bf16 (stats stay f32-exact)
    tile = acc.reshape(TH, Wo, cout_p)[:, :, :Cout]
    conv_ref[...] = tile.reshape(conv_ref.shape).astype(conv_ref.dtype)


# ---------------------------------------------------------------------------
# pass 2: per-channel affine (folded BN) + LeakyReLU(0.1)
# ---------------------------------------------------------------------------
def _bn_act_kernel(y_ref, scale_ref, shift_ref, o_ref):
    y = y_ref[...].astype(jnp.float32)                        # (1, TH2, Wo, Cout)
    yn = y * scale_ref[...] + shift_ref[...]                  # broadcast (1, Cout)
    o_ref[...] = jnp.where(yn >= 0, yn, 0.1 * yn).astype(o_ref.dtype)


def cnn_block(x_nchw, weight_oihw, bias, gamma, beta, *, stride=1, eps=1e-5):
    """NCHW in / NCHW out; params in PyTorch shapes (Conv2d 3x3 pad=1 + BN2d
    with batch statistics (training mode) + LeakyReLU(0.1)).

    Notes:
      * running_mean / running_var buffer updates are not produced.
      * the conv bias is dropped: batch-statistics BN subtracts the per-channel
        mean, which cancels an additive per-channel bias exactly.  Re-add it if
        this block is ever evaluated with running (eval-mode) statistics.
    """
    N, Cin, H, W = x_nchw.shape
    Cout = weight_oihw.shape[0]
    Ho = (H + 2 - 3) // stride + 1
    Wo = (W + 2 - 3) // stride + 1

    # Cout lane-dense for the MXU / BN reductions; Cin only rounded to full
    # 128-lane width when already large (padding tiny Cin to 128 would inflate
    # x's HBM traffic by up to 16-32x).
    Cin_p = _round_up(Cin, 128) if Cin >= 96 else _round_up(Cin, 8)
    Cout_p = _round_up(Cout, 128)

    # TODO(synk): in a full network keep activations NHWC (and bf16) end to end
    # and fold this transpose/pad into neighbouring blocks.
    x = jnp.transpose(x_nchw, (0, 2, 3, 1))
    x = jnp.pad(x, ((0, 0), (1, 1), (1, 1), (0, Cin_p - Cin))).astype(jnp.bfloat16)

    w = jnp.transpose(weight_oihw, (2, 3, 1, 0)).astype(jnp.float32)     # HWIO
    w = jnp.pad(w, ((0, 0), (0, 0), (0, Cin_p - Cin), (0, Cout_p - Cout)))
    w = w.reshape(9 * Cin_p, Cout_p).astype(jnp.bfloat16)
    del bias                                    # cancelled by batch-mean subtraction

    TH = _pick_conv_row_tile(Ho, Wo, W + 2, Cin_p, Cout_p, Cout, stride)
    RT = max(Ho // TH, 1)

    # TODO(synk): for very large images (esp. v7x, 64 MiB VMEM/TC) switch x to
    # memory_space=pl.ANY + a manually double-buffered halo-row DMA instead of
    # keeping the whole padded image resident.
    cparams = pltpu.CompilerParams(
        dimension_semantics=("parallel", "parallel"),
        # fits v7x's 64 MiB/TC; v5e/v6e (128 MiB) could raise this further.
        vmem_limit_bytes=64 * 1024 * 1024,
    )

    conv_out, stats = pl.pallas_call(
        functools.partial(_conv_stats_kernel, TH=TH, Wo=Wo, Cout=Cout, stride=stride),
        out_shape=(
            jax.ShapeDtypeStruct((N, Ho, Wo, Cout), jnp.bfloat16),   # bf16, cropped
            jax.ShapeDtypeStruct((N, RT, 2, Cout_p), jnp.float32),
        ),
        grid_spec=pltpu.PrefetchScalarGridSpec(
            num_scalar_prefetch=0,
            grid=(N, RT),
            in_specs=[
                _invariant_spec((1, H + 2, W + 2, Cin_p), lambda n, r: (n, 0, 0, 0)),
                _invariant_spec((9 * Cin_p, Cout_p), lambda n, r: (0, 0)),
            ],
            out_specs=(
                pl.BlockSpec((1, TH, Wo, Cout), lambda n, r: (n, r, 0, 0)),
                pl.BlockSpec((1, 1, 2, Cout_p), lambda n, r: (n, r, 0, 0)),
            ),
        ),
        compiler_params=cparams,
    )(x, w)

    # BN finalize (tiny, O(C)): biased variance, torch training-mode semantics.
    cnt = jnp.float32(N * Ho * Wo)
    tot = jnp.sum(stats, axis=(0, 1))[:, :Cout]               # (2, Cout)
    mean = tot[0] / cnt
    var = jnp.maximum(tot[1] / cnt - mean * mean, 0.0)        # clamp f32 cancellation
    scale = gamma.astype(jnp.float32) * jax.lax.rsqrt(var + eps)
    shift = beta.astype(jnp.float32) - mean * scale

    TH2 = _pick_bn_row_tile(N, Ho, Wo, Cout)
    RT2 = max(Ho // TH2, 1)

    y = pl.pallas_call(
        _bn_act_kernel,
        out_shape=jax.ShapeDtypeStruct((N, Ho, Wo, Cout), jnp.float32),
        grid_spec=pltpu.PrefetchScalarGridSpec(
            num_scalar_prefetch=0,
            grid=(N, RT2),
            in_specs=[
                pl.BlockSpec((1, TH2, Wo, Cout), lambda n, r: (n, r, 0, 0)),
                _invariant_spec((1, Cout), lambda n, r: (0, 0)),
                _invariant_spec((1, Cout), lambda n, r: (0, 0)),
            ],
            out_specs=pl.BlockSpec((1, TH2, Wo, Cout), lambda n, r: (n, r, 0, 0)),
        ),
        compiler_params=cparams,
    )(conv_out, scale.reshape(1, Cout), shift.reshape(1, Cout))

    # TODO(synk): the NHWC->NCHW transpose is one extra XLA pass over the
    # (already channel-cropped) activation; a full network should stay NHWC.
    return jnp.transpose(y, (0, 3, 1, 2))


def reference(x_nchw, weight_oihw, bias, gamma, beta, *, stride=1, eps=1e-5):
    """Pure-JAX f32 reference mirroring torch semantics (BN training mode)."""
    y = jax.lax.conv_general_dilated(
        x_nchw.astype(jnp.float32), weight_oihw.astype(jnp.float32),
        window_strides=(stride, stride), padding=((1, 1), (1, 1)),
        dimension_numbers=("NCHW", "OIHW", "NCHW"))
    y = y + bias[None, :, None, None]
    mean = jnp.mean(y, axis=(0, 2, 3), keepdims=True)
    var = jnp.mean((y - mean) ** 2, axis=(0, 2, 3), keepdims=True)
    yn = (y - mean) * jax.lax.rsqrt(var + eps) * gamma[None, :, None, None] \
         + beta[None, :, None, None]
    return jnp.where(yn >= 0, yn, 0.1 * yn)


if __name__ == "__main__":
    # small shapes consistent with the module: batch=2, Cin=4, Cout=8, 16x16
    N, Cin, Cout, H, W = 2, 4, 8, 16, 16
    stride = 1

    key = jax.random.PRNGKey(0)
    kx, kw, kb, kg, kbt = jax.random.split(key, 5)
    x = jax.random.normal(kx, (N, Cin, H, W), jnp.float32)
    weight = jax.random.normal(kw, (Cout, Cin, 3, 3), jnp.float32) * 0.1
    bias = jax.random.normal(kb, (Cout,), jnp.float32) * 0.1
    gamma = 1.0 + 0.05 * jax.random.normal(kg, (Cout,), jnp.float32)
    beta = 0.05 * jax.random.normal(kbt, (Cout,), jnp.float32)

    fn = jax.jit(functools.partial(cnn_block, stride=stride))
    out = jax.block_until_ready(fn(x, weight, bias, gamma, beta))

    ref = jax.block_until_ready(reference(x, weight, bias, gamma, beta, stride=stride))
    assert out.shape == ref.shape, (out.shape, ref.shape)
    max_err = float(jnp.max(jnp.abs(out - ref)))
    # bf16 MXU inputs and bf16 conv intermediate with f32 accumulation / stats.
    assert jnp.allclose(out, ref, rtol=2e-2, atol=2e-2), max_err
    print("KERNEL_OK")
</pallas_src>

<mosaic_0001>
module attributes {stable_mosaic.version = 11 : i64} {
  func.func @_conv_stats_kernel(%arg0: i32, %arg1: i32, %arg2: memref<1x18x18x8xbf16, #tpu.memory_space<vmem>>, %arg3: memref<72x128xbf16, #tpu.memory_space<vmem>>, %arg4: memref<1x8x16x8xbf16, #tpu.memory_space<vmem>>, %arg5: memref<1x1x2x128xf32, #tpu.memory_space<vmem>>) attributes {dimension_semantics = [#tpu.dimension_semantics<parallel>, #tpu.dimension_semantics<parallel>], iteration_bounds = array<i64: 2, 2>, scalar_prefetch = 0 : i64, scratch_operands = 0 : i64, tpu.core_type = #tpu.core_type<tc>, window_params = [{transform_indices = @transform_0, window_bounds = array<i64: 1, 18, 18, 8>}, {pipeline_mode = #tpu.pipeline_mode<synchronous>, transform_indices = @transform_1, window_bounds = array<i64: 72, 128>}, {transform_indices = @transform_2, window_bounds = array<i64: 1, 8, 16, 8>}, {transform_indices = @transform_3, window_bounds = array<i64: 1, 1, 2, 128>}]} {
    %c8_i32 = arith.constant 8 : i32
    %0 = arith.muli %arg1, %c8_i32 : i32
    %1 = tpu.assume_multiple %0, 8 : i32
    %c0 = arith.constant 0 : index
    %2 = arith.index_cast %1 : i32 to index
    %c0_0 = arith.constant 0 : index
    %c0_1 = arith.constant 0 : index
    %3 = vector.load %arg2[%c0, %2, %c0_0, %c0_1] : memref<1x18x18x8xbf16, #tpu.memory_space<vmem>>, vector<1x10x18x8xbf16>
    %4 = vector.shape_cast %3 : vector<1x10x18x8xbf16> to vector<10x18x8xbf16>
    %cst = arith.constant 0.000000e+00 : f32
    %5 = vector.broadcast %cst : f32 to vector<128x128xf32>
    %c0_2 = arith.constant 0 : index
    %c0_3 = arith.constant 0 : index
    %6 = vector.load %arg3[%c0_2, %c0_3] : memref<72x128xbf16, #tpu.memory_space<vmem>>, vector<8x128xbf16>
    %7 = vector.extract_strided_slice %4 {offsets = [0, 0, 0], sizes = [8, 16, 8], strides = [1, 1, 1]} : vector<10x18x8xbf16> to vector<8x16x8xbf16>
    %8 = vector.shape_cast %7 : vector<8x16x8xbf16> to vector<128x8xbf16>
    %cst_4 = arith.constant dense<0.000000e+00> : vector<128x128xf32>
    %9 = tpu.matmul %8, %6, %cst_4 {dimension_numbers = #tpu.dot_dimension_numbers<[1], [0], [0], [1], [0, 0, 1, 1], [], []>} : vector<128x8xbf16>, vector<8x128xbf16>, vector<128x128xf32> -> vector<128x128xf32>
    %10 = arith.addf %5, %9 : vector<128x128xf32>
    %c8 = arith.constant 8 : index
    %c0_5 = arith.constant 0 : index
    %11 = vector.load %arg3[%c8, %c0_5] : memref<72x128xbf16, #tpu.memory_space<vmem>>, vector<8x128xbf16>
    %12 = vector.extract_strided_slice %4 {offsets = [0, 1, 0], sizes = [8, 16, 8], strides = [1, 1, 1]} : vector<10x18x8xbf16> to vector<8x16x8xbf16>
    %13 = vector.shape_cast %12 : vector<8x16x8xbf16> to vector<128x8xbf16>
    %cst_6 = arith.constant dense<0.000000e+00> : vector<128x128xf32>
    %14 = tpu.matmul %13, %11, %cst_6 {dimension_numbers = #tpu.dot_dimension_numbers<[1], [0], [0], [1], [0, 0, 1, 1], [], []>} : vector<128x8xbf16>, vector<8x128xbf16>, vector<128x128xf32> -> vector<128x128xf32>
    %15 = arith.addf %10, %14 : vector<128x128xf32>
    %c16 = arith.constant 16 : index
    %c0_7 = arith.constant 0 : index
    %16 = vector.load %arg3[%c16, %c0_7] : memref<72x128xbf16, #tpu.memory_space<vmem>>, vector<8x128xbf16>
    %17 = vector.extract_strided_slice %4 {offsets = [0, 2, 0], sizes = [8, 16, 8], strides = [1, 1, 1]} : vector<10x18x8xbf16> to vector<8x16x8xbf16>
    %18 = vector.shape_cast %17 : vector<8x16x8xbf16> to vector<128x8xbf16>
    %cst_8 = arith.constant dense<0.000000e+00> : vector<128x128xf32>
    %19 = tpu.matmul %18, %16, %cst_8 {dimension_numbers = #tpu.dot_dimension_numbers<[1], [0], [0], [1], [0, 0, 1, 1], [], []>} : vector<128x8xbf16>, vector<8x128xbf16>, vector<128x128xf32> -> vector<128x128xf32>
    %20 = arith.addf %15, %19 : vector<128x128xf32>
    %c24 = arith.constant 24 : index
    %c0_9 = arith.constant 0 : index
    %21 = vector.load %arg3[%c24, %c0_9] : memref<72x128xbf16, #tpu.memory_space<vmem>>, vector<8x128xbf16>
    %22 = vector.extract_strided_slice %4 {offsets = [1, 0, 0], sizes = [8, 16, 8], strides = [1, 1, 1]} : vector<10x18x8xbf16> to vector<8x16x8xbf16>
    %23 = vector.shape_cast %22 : vector<8x16x8xbf16> to vector<128x8xbf16>
    %cst_10 = arith.constant dense<0.000000e+00> : vector<128x128xf32>
    %24 = tpu.matmul %23, %21, %cst_10 {dimension_numbers = #tpu.dot_dimension_numbers<[1], [0], [0], [1], [0, 0, 1, 1], [], []>} : vector<128x8xbf16>, vector<8x128xbf16>, vector<128x128xf32> -> vector<128x128xf32>
    %25 = arith.addf %20, %24 : vector<128x128xf32>
    %c32 = arith.constant 32 : index
    %c0_11 = arith.constant 0 : index
    %26 = vector.load %arg3[%c32, %c0_11] : memref<72x128xbf16, #tpu.memory_space<vmem>>, vector<8x128xbf16>
    %27 = vector.extract_strided_slice %4 {offsets = [1, 1, 0], sizes = [8, 16, 8], strides = [1, 1, 1]} : vector<10x18x8xbf16> to vector<8x16x8xbf16>
    %28 = vector.shape_cast %27 : vector<8x16x8xbf16> to vector<128x8xbf16>
    %cst_12 = arith.constant dense<0.000000e+00> : vector<128x128xf32>
    %29 = tpu.matmul %28, %26, %cst_12 {dimension_numbers = #tpu.dot_dimension_numbers<[1], [0], [0], [1], [0, 0, 1, 1], [], []>} : vector<128x8xbf16>, vector<8x128xbf16>, vector<128x128xf32> -> vector<128x128xf32>
    %30 = arith.addf %25, %29 : vector<128x128xf32>
    %c40 = arith.constant 40 : index
    %c0_13 = arith.constant 0 : index
    %31 = vector.load %arg3[%c40, %c0_13] : memref<72x128xbf16, #tpu.memory_space<vmem>>, vector<8x128xbf16>
    %32 = vector.extract_strided_slice %4 {offsets = [1, 2, 0], sizes = [8, 16, 8], strides = [1, 1, 1]} : vector<10x18x8xbf16> to vector<8x16x8xbf16>
    %33 = vector.shape_cast %32 : vector<8x16x8xbf16> to vector<128x8xbf16>
    %cst_14 = arith.constant dense<0.000000e+00> : vector<128x128xf32>
    %34 = tpu.matmul %33, %31, %cst_14 {dimension_numbers = #tpu.dot_dimension_numbers<[1], [0], [0], [1], [0, 0, 1, 1], [], []>} : vector<128x8xbf16>, vector<8x128xbf16>, vector<128x128xf32> -> vector<128x128xf32>
    %35 = arith.addf %30, %34 : vector<128x128xf32>
    %c48 = arith.constant 48 : index
    %c0_15 = arith.constant 0 : index
    %36 = vector.load %arg3[%c48, %c0_15] : memref<72x128xbf16, #tpu.memory_space<vmem>>, vector<8x128xbf16>
    %37 = vector.extract_strided_slice %4 {offsets = [2, 0, 0], sizes = [8, 16, 8], strides = [1, 1, 1]} : vector<10x18x8xbf16> to vector<8x16x8xbf16>
    %38 = vector.shape_cast %37 : vector<8x16x8xbf16> to vector<128x8xbf16>
    %cst_16 = arith.constant dense<0.000000e+00> : vector<128x128xf32>
    %39 = tpu.matmul %38, %36, %cst_16 {dimension_numbers = #tpu.dot_dimension_numbers<[1], [0], [0], [1], [0, 0, 1, 1], [], []>} : vector<128x8xbf16>, vector<8x128xbf16>, vector<128x128xf32> -> vector<128x128xf32>
    %40 = arith.addf %35, %39 : vector<128x128xf32>
    %c56 = arith.constant 56 : index
    %c0_17 = arith.constant 0 : index
    %41 = vector.load %arg3[%c56, %c0_17] : memref<72x128xbf16, #tpu.memory_space<vmem>>, vector<8x128xbf16>
    %42 = vector.extract_strided_slice %4 {offsets = [2, 1, 0], sizes = [8, 16, 8], strides = [1, 1, 1]} : vector<10x18x8xbf16> to vector<8x16x8xbf16>
    %43 = vector.shape_cast %42 : vector<8x16x8xbf16> to vector<128x8xbf16>
    %cst_18 = arith.constant dense<0.000000e+00> : vector<128x128xf32>
    %44 = tpu.matmul %43, %41, %cst_18 {dimension_numbers = #tpu.dot_dimension_numbers<[1], [0], [0], [1], [0, 0, 1, 1], [], []>} : vector<128x8xbf16>, vector<8x128xbf16>, vector<128x128xf32> -> vector<128x128xf32>
    %45 = arith.addf %40, %44 : vector<128x128xf32>
    %c64 = arith.constant 64 : index
    %c0_19 = arith.constant 0 : index
    %46 = vector.load %arg3[%c64, %c0_19] : memref<72x128xbf16, #tpu.memory_space<vmem>>, vector<8x128xbf16>
    %47 = vector.extract_strided_slice %4 {offsets = [2, 2, 0], sizes = [8, 16, 8], strides = [1, 1, 1]} : vector<10x18x8xbf16> to vector<8x16x8xbf16>
    %48 = vector.shape_cast %47 : vector<8x16x8xbf16> to vector<128x8xbf16>
    %cst_20 = arith.constant dense<0.000000e+00> : vector<128x128xf32>
    %49 = tpu.matmul %48, %46, %cst_20 {dimension_numbers = #tpu.dot_dimension_numbers<[1], [0], [0], [1], [0, 0, 1, 1], [], []>} : vector<128x8xbf16>, vector<8x128xbf16>, vector<128x128xf32> -> vector<128x128xf32>
    %50 = arith.addf %45, %49 : vector<128x128xf32>
    %cst_21 = arith.constant dense<0.000000e+00> : vector<128xf32>
    %51 = vector.multi_reduction <add>, %50, %cst_21 [0] : vector<128x128xf32> to vector<128xf32>
    %52 = vector.shape_cast %51 : vector<128xf32> to vector<1x1x1x128xf32>
    %c0_22 = arith.constant 0 : index
    %c0_23 = arith.constant 0 : index
    %c0_24 = arith.constant 0 : index
    %c0_25 = arith.constant 0 : index
    %53 = vector.load %arg5[%c0_22, %c0_23, %c0_24, %c0_25] : memref<1x1x2x128xf32, #tpu.memory_space<vmem>>, vector<1x1x1x128xf32>
    tpu.vector_store %arg5[%c0_22, %c0_23, %c0_24, %c0_25], %52 {strides = array<i32>} : memref<1x1x2x128xf32, #tpu.memory_space<vmem>>, vector<1x1x1x128xf32>,
    %54 = arith.mulf %50, %50 : vector<128x128xf32>
    %cst_26 = arith.constant dense<0.000000e+00> : vector<128xf32>
    %55 = vector.multi_reduction <add>, %54, %cst_26 [0] : vector<128x128xf32> to vector<128xf32>
    %56 = vector.shape_cast %55 : vector<128xf32> to vector<1x1x1x128xf32>
    %c0_27 = arith.constant 0 : index
    %c0_28 = arith.constant 0 : index
    %c1 = arith.constant 1 : index
    %c0_29 = arith.constant 0 : index
    %57 = vector.load %arg5[%c0_27, %c0_28, %c1, %c0_29] : memref<1x1x2x128xf32, #tpu.memory_space<vmem>>, vector<1x1x1x128xf32>
    tpu.vector_store %arg5[%c0_27, %c0_28, %c1, %c0_29], %56 {strides = array<i32>} : memref<1x1x2x128xf32, #tpu.memory_space<vmem>>, vector<1x1x1x128xf32>,
    %58 = vector.shape_cast %50 : vector<128x128xf32> to vector<8x16x128xf32>
    %59 = vector.extract_strided_slice %58 {offsets = [0, 0, 0], sizes = [8, 16, 8], strides = [1, 1, 1]} : vector<8x16x128xf32> to vector<8x16x8xf32>
    %60 = vector.shape_cast %59 : vector<8x16x8xf32> to vector<1x8x16x8xf32>
    %61 = arith.truncf %60 : vector<1x8x16x8xf32> to vector<1x8x16x8xbf16>
    %c0_30 = arith.constant 0 : index
    %c0_31 = arith.constant 0 : index
    %c0_32 = arith.constant 0 : index
    %c0_33 = arith.constant 0 : index
    %62 = vector.load %arg4[%c0_30, %c0_31, %c0_32, %c0_33] : memref<1x8x16x8xbf16, #tpu.memory_space<vmem>>, vector<1x8x16x8xbf16>
    tpu.vector_store %arg4[%c0_30, %c0_31, %c0_32, %c0_33], %61 {strides = array<i32>} : memref<1x8x16x8xbf16, #tpu.memory_space<vmem>>, vector<1x8x16x8xbf16>,
    return
  }
  func.func @transform_0(%arg0: i32, %arg1: i32) -> (i32, i32, i32, i32) {
    %c0_i32 = arith.constant 0 : i32
    %c0_i32_0 = arith.constant 0 : i32
    %c0_i32_1 = arith.constant 0 : i32
    %c0_i32_2 = arith.constant 0 : i32
    return %arg0, %c0_i32, %c0_i32_0, %c0_i32_1 : i32, i32, i32, i32
  }
  func.func @transform_1(%arg0: i32, %arg1: i32) -> (i32, i32) {
    %c0_i32 = arith.constant 0 : i32
    %c0_i32_0 = arith.constant 0 : i32
    %c0_i32_1 = arith.constant 0 : i32
    return %c0_i32, %c0_i32_0 : i32, i32
  }
  func.func @transform_2(%arg0: i32, %arg1: i32) -> (i32, i32, i32, i32) {
    %c0_i32 = arith.constant 0 : i32
    %c0_i32_0 = arith.constant 0 : i32
    %c0_i32_1 = arith.constant 0 : i32
    return %arg0, %arg1, %c0_i32, %c0_i32_0 : i32, i32, i32, i32
  }
  func.func @transform_3(%arg0: i32, %arg1: i32) -> (i32, i32, i32, i32) {
    %c0_i32 = arith.constant 0 : i32
    %c0_i32_0 = arith.constant 0 : i32
    %c0_i32_1 = arith.constant 0 : i32
    return %arg0, %arg1, %c0_i32, %c0_i32_0 : i32, i32, i32, i32
  }
}

module attributes {stable_mosaic.version = 11 : i64} {
  func.func @_bn_act_kernel(%arg0: i32, %arg1: i32, %arg2: memref<1x16x16x8xbf16, #tpu.memory_space<vmem>>, %arg3: memref<1x8xf32, #tpu.memory_space<vmem>>, %arg4: memref<1x8xf32, #tpu.memory_space<vmem>>, %arg5: memref<1x16x16x8xf32, #tpu.memory_space<vmem>>) attributes {dimension_semantics = [#tpu.dimension_semantics<parallel>, #tpu.dimension_semantics<parallel>], iteration_bounds = array<i64: 2, 1>, scalar_prefetch = 0 : i64, scratch_operands = 0 : i64, tpu.core_type = #tpu.core_type<tc>, window_params = [{transform_indices = @transform_0, window_bounds = array<i64: 1, 16, 16, 8>}, {pipeline_mode = #tpu.pipeline_mode<synchronous>, transform_indices = @transform_1, window_bounds = array<i64: 1, 8>}, {pipeline_mode = #tpu.pipeline_mode<synchronous>, transform_indices = @transform_2, window_bounds = array<i64: 1, 8>}, {transform_indices = @transform_3, window_bounds = array<i64: 1, 16, 16, 8>}]} {
    %c0 = arith.constant 0 : index
    %c0_0 = arith.constant 0 : index
    %c0_1 = arith.constant 0 : index
    %c0_2 = arith.constant 0 : index
    %0 = vector.load %arg2[%c0, %c0_0, %c0_1, %c0_2] : memref<1x16x16x8xbf16, #tpu.memory_space<vmem>>, vector<1x16x16x8xbf16>
    %1 = arith.extf %0 : vector<1x16x16x8xbf16> to vector<1x16x16x8xf32>
    %c0_3 = arith.constant 0 : index
    %c0_4 = arith.constant 0 : index
    %2 = vector.load %arg3[%c0_3, %c0_4] : memref<1x8xf32, #tpu.memory_space<vmem>>, vector<1x8xf32>
    %3 = vector.shape_cast %2 : vector<1x8xf32> to vector<1x1x1x8xf32>
    %4 = vector.broadcast %3 : vector<1x1x1x8xf32> to vector<1x16x16x8xf32>
    %5 = arith.mulf %1, %4 : vector<1x16x16x8xf32>
    %c0_5 = arith.constant 0 : index
    %c0_6 = arith.constant 0 : index
    %6 = vector.load %arg4[%c0_5, %c0_6] : memref<1x8xf32, #tpu.memory_space<vmem>>, vector<1x8xf32>
    %7 = vector.shape_cast %6 : vector<1x8xf32> to vector<1x1x1x8xf32>
    %8 = vector.broadcast %7 : vector<1x1x1x8xf32> to vector<1x16x16x8xf32>
    %9 = arith.addf %5, %8 : vector<1x16x16x8xf32>
    %cst = arith.constant 0.000000e+00 : f32
    %10 = vector.broadcast %cst : f32 to vector<1x16x16x8xf32>
    %11 = arith.cmpf oge, %9, %10 : vector<1x16x16x8xf32>
    %cst_7 = arith.constant 1.000000e-01 : f32
    %12 = vector.broadcast %cst_7 : f32 to vector<1x16x16x8xf32>
    %13 = arith.mulf %12, %9 : vector<1x16x16x8xf32>
    %14 = arith.select %11, %9, %13 : vector<1x16x16x8xi1>, vector<1x16x16x8xf32>
    %c0_8 = arith.constant 0 : index
    %c0_9 = arith.constant 0 : index
    %c0_10 = arith.constant 0 : index
    %c0_11 = arith.constant 0 : index
    %15 = vector.load %arg5[%c0_8, %c0_9, %c0_10, %c0_11] : memref<1x16x16x8xf32, #tpu.memory_space<vmem>>, vector<1x16x16x8xf32>
    tpu.vector_store %arg5[%c0_8, %c0_9, %c0_10, %c0_11], %14 {strides = array<i32>} : memref<1x16x16x8xf32, #tpu.memory_space<vmem>>, vector<1x16x16x8xf32>,
    return
  }
  func.func @transform_0(%arg0: i32, %arg1: i32) -> (i32, i32, i32, i32) {
    %c0_i32 = arith.constant 0 : i32
    %c0_i32_0 = arith.constant 0 : i32
    %c0_i32_1 = arith.constant 0 : i32
    return %arg0, %arg1, %c0_i32, %c0_i32_0 : i32, i32, i32, i32
  }
  func.func @transform_1(%arg0: i32, %arg1: i32) -> (i32, i32) {
    %c0_i32 = arith.constant 0 : i32
    %c0_i32_0 = arith.constant 0 : i32
    %c0_i32_1 = arith.constant 0 : i32
    return %c0_i32, %c0_i32_0 : i32, i32
  }
  func.func @transform_2(%arg0: i32, %arg1: i32) -> (i32, i32) {
    %c0_i32 = arith.constant 0 : i32
    %c0_i32_0 = arith.constant 0 : i32
    %c0_i32_1 = arith.constant 0 : i32
    return %c0_i32, %c0_i32_0 : i32, i32
  }
  func.func @transform_3(%arg0: i32, %arg1: i32) -> (i32, i32, i32, i32) {
    %c0_i32 = arith.constant 0 : i32
    %c0_i32_0 = arith.constant 0 : i32
    %c0_i32_1 = arith.constant 0 : i32
    return %arg0, %arg1, %c0_i32, %c0_i32_0 : i32, i32, i32, i32
  }
}

</mosaic_0001>

<llo_original>
// kernel: cnn_block.3
$region0: #{cnn_block.3}
  #allocation0 [shape = 'u32[]', space=smem, size = 0x4, offset = 0x4, fixed_abs, tag = 'smem constant byte address 0x4 - core index']
  #allocation1 [shape = 'u32[144,128]{1,0:T(1,128)}', space=vmem, size = 0x12000, scoped, tag = 'internal scratch']
  %s0 = inlined_call_operand.hbm [shape: bf16[2,16,16,8], index: 0, kind: input, shape index: {}]
  %s1 = inlined_call_operand.hbm [shape: f32[1,8], index: 1, kind: input, shape index: {}]
  %s2 = inlined_call_operand.hbm [shape: f32[1,8], index: 2, kind: input, shape index: {}]
  %s3 = inlined_call_operand.hbm [shape: f32[2,16,16,8], index: 3, kind: output, shape index: {}]
  %s4 = sld [smem:[#allocation0]]
  $region57: #{cnn_block.3} parent=0
    _
  %s6 = ssub.s32 1, %s4
  %s7 = scalar_select 0, %s6, %s4
  $region1: #{cnn_block.3} parent=0
    #allocation2 [shape = 'u8[131072]{0}', space=vmem, size = 0x20000, scoped, tag = 'input window, operand 0']
    #allocation3 [shape = 's32[2]{0}', space=sflag, size = 0x8, scoped, tag = 'scoped memory for cnn_block.3']
    #allocation4 [shape = 's32[2]{0}', space=sflag, size = 0x8, scoped, tag = 'scoped memory for cnn_block.3']
    #allocation5 [shape = 'u8[512]{0}', space=vmem, size = 0x400, scoped, tag = 'input window, operand 1, single buffered']
    #allocation6 [shape = 's32[1]{0}', space=sflag, size = 0x4, scoped, tag = 'scoped memory for cnn_block.3']
    #allocation7 [shape = 'u8[512]{0}', space=vmem, size = 0x400, scoped, tag = 'input window, operand 2, single buffered']
    #allocation8 [shape = 'u8[262144]{0}', space=vmem, size = 0x40000, scoped, tag = 'output window, operand 0']
    %8 = vsyncpa [#allocation3], 0
    %s9 = scalar_lea.sflag [#allocation3], 1
    %10 = vsyncpa %s9, 0
    %11 = vsyncpa [#allocation6], 0
    %12 = vsyncpa [#allocation4], 0
    %s13 = scalar_lea.sflag [#allocation4], 1
    %14 = vsyncpa %s13, 0
    loop: start=0, step=1, limit=4
    $region2: #{cnn_block.3} parent=1 // loop_pre_header
      _
    $region3: #{cnn_block.3} parent=1 // loop_header
      %s16 = sphi 0, %s20
      %p17 = scmp.ge.s32.totalorder %s16, 4
      %s23 = sphi 0, %s35
      %s24 = sphi 0, %s31
      %s25 = sphi 0, %s23
      %s26 = sphi 0, %s24
      %s27 = sphi 0, %s25
      %s28 = sphi 0, %s26
      %s40 = sphi 0, %s42
      %s43 = sphi 0, %s40
      %s44 = sphi 0, %s43
      %s60 = sphi 0, %s44
      %s64 = sphi 0, %s64
      %s66 = sphi 0, %s64
      %s67 = sphi 0, %s66
      %s81 = sphi 0, %s67
      %s85 = sphi 0, %s85
      %s87 = sphi 0, %s85
      %s88 = sphi 0, %s87
      %s102 = sphi 0, %s88
      %s110 = sphi 0, %s112
      %s113 = sphi 0, %s110
      %s114 = sphi 0, %s113
      %s130 = sphi 0, %s114
    $region4: #{cnn_block.3} parent=1 // loop_header_branch
      %19 = sbr.rel (%p17) target = $region8
    $region5: #{cnn_block.3} parent=1 // loop_body
      %s21 = ssub.s32 %s16, 1
      %s22 = ssub.s32 %s16, 2
      %s29 = sadd.s32 1, %s24
      %p30 = scmp.ge.s32.totalorder %s29, 1
      %s31 = scalar_select %p30, 0, %s29
      %s32 = sadd.s32 1, %s23
      %s33 = scalar_select %p30, %s32, %s23
      %p34 = scmp.ge.s32.totalorder %s33, 2
      %s35 = scalar_select %p34, 0, %s33
      %s36 = ssub.s32 %s23, %s35
      %s37 = ssub.s32 %s24, %s31
      %s38 = sor.u32 %s36, %s37
      %p39 = scmp.eq.s32.totalorder %s38, 0
      %s41 = sadd.s32 %s40, 1
      %s42 = scalar_select %p39, %s40, %s41
      %p45 = pneg %p39
      %p46 = scmp.eq.s32.totalorder %s16, 1
      %p47 = por %p45, %p46
      %p48 = scmp.ne.s32.totalorder %s40, %s43
      %p49 = scmp.eq.s32.totalorder %s16, 0
      %p50 = por %p48, %p49
      %p51 = scmp.ne.s32.totalorder %s40, %s43
      %p52 = scmp.eq.s32.totalorder %s21, 1
      %p53 = por %p51, %p52
      %p54 = scmp.ne.s32.totalorder %s43, %s44
      %p55 = scmp.eq.s32.totalorder %s21, 0
      %p56 = por %p54, %p55
      %p57 = scmp.ne.s32.totalorder %s43, %s44
      %p58 = scmp.eq.s32.totalorder %s22, 1
      %p59 = por %p57, %p58
      %p61 = scmp.ne.s32.totalorder %s44, %s60
      %p62 = scmp.eq.s32.totalorder %s22, 0
      %p63 = por %p61, %p62
      %s65 = sadd.s32 %s64, 1
      %p68 = scmp.eq.s32.totalorder %s16, 1
      %p69 = scmp.ne.s32.totalorder %s64, %s66
      %p70 = scmp.eq.s32.totalorder %s16, 0
      %p71 = por %p69, %p70
      %p72 = scmp.ne.s32.totalorder %s64, %s66
      %p73 = scmp.eq.s32.totalorder %s21, 1
      %p74 = por %p72, %p73
      %p75 = scmp.ne.s32.totalorder %s66, %s67
      %p76 = scmp.eq.s32.totalorder %s21, 0
      %p77 = por %p75, %p76
      %p78 = scmp.ne.s32.totalorder %s66, %s67
      %p79 = scmp.eq.s32.totalorder %s22, 1
      %p80 = por %p78, %p79
      %p82 = scmp.ne.s32.totalorder %s67, %s81
      %p83 = scmp.eq.s32.totalorder %s22, 0
      %p84 = por %p82, %p83
      %s86 = sadd.s32 %s85, 1
      %p89 = scmp.eq.s32.totalorder %s16, 1
      %p90 = scmp.ne.s32.totalorder %s85, %s87
      %p91 = scmp.eq.s32.totalorder %s16, 0
      %p92 = por %p90, %p91
      %p93 = scmp.ne.s32.totalorder %s85, %s87
      %p94 = scmp.eq.s32.totalorder %s21, 1
      %p95 = por %p93, %p94
      %p96 = scmp.ne.s32.totalorder %s87, %s88
      %p97 = scmp.eq.s32.totalorder %s21, 0
      %p98 = por %p96, %p97
      %p99 = scmp.ne.s32.totalorder %s87, %s88
      %p100 = scmp.eq.s32.totalorder %s22, 1
      %p101 = por %p99, %p100
      %p103 = scmp.ne.s32.totalorder %s88, %s102
      %p104 = scmp.eq.s32.totalorder %s22, 0
      %p105 = por %p103, %p104
      %s106 = ssub.s32 %s23, %s35
      %s107 = ssub.s32 %s24, %s31
      %s108 = sor.u32 %s106, %s107
      %p109 = scmp.eq.s32.totalorder %s108, 0
      %s111 = sadd.s32 %s110, 1
      %s112 = scalar_select %p109, %s110, %s111
      %p115 = pneg %p109
      %p116 = scmp.eq.s32.totalorder %s16, 1
      %p117 = por %p115, %p116
      %p118 = scmp.ne.s32.totalorder %s110, %s113
      %p119 = scmp.eq.s32.totalorder %s16, 0
      %p120 = por %p118, %p119
      %p121 = scmp.ne.s32.totalorder %s110, %s113
      %p122 = scmp.eq.s32.totalorder %s21, 1
      %p123 = por %p121, %p122
      %p124 = scmp.ne.s32.totalorder %s113, %s114
      %p125 = scmp.eq.s32.totalorder %s21, 0
      %p126 = por %p124, %p125
      %p127 = scmp.ne.s32.totalorder %s113, %s114
      %p128 = scmp.eq.s32.totalorder %s22, 1
      %p129 = por %p127, %p128
      %p131 = scmp.ne.s32.totalorder %s114, %s130
      %p132 = scmp.eq.s32.totalorder %s22, 0
      %p133 = por %p131, %p132
      %p134 = scmp.le.s32.totalorder 1, %s16
      %p135 = scmp.lt.s32.totalorder %s16, 3
      %p136 = pnand %p134, %p135
      %p137 = pneg %p136
      // Predicated region
      $region9: #{cnn_block.3} parent=5 // pred_check
        _
      $region10: #{cnn_block.3} parent=5 // pred_check_branch
        %139 = sbr.rel (%p136) target = $region12
      $region11: #{cnn_block.3} parent=5 // pred_region
        %s140 = ssub.s32 %s16, 1
        // Predicated region
        $region13: #{cnn_block.3} parent=11 // pred_check
          %p141 = pneg %p77
        $region14: #{cnn_block.3} parent=11 // pred_check_branch
          %143 = sbr.rel (%p141) target = $region16
        $region15: #{cnn_block.3} parent=11 // pred_region
          %s145 = ssub.s32 16, 16
          %146 = vsyncadd [#allocation6], %s145
          %s148 = sshll.u32 [#allocation5], 4
          %s149 = int_to_ptr.vmem [resolvable:$true] %s148
          %151 = dma.hbm_to_vmem [thread:$0]  %s1, 16, %s149, [#allocation6]
        $region16: #{cnn_block.3} parent=11 // pred_fallthru
          _
        // Predicated region
        $region17: #{cnn_block.3} parent=11 // pred_check
          %p152 = pneg %p98
        $region18: #{cnn_block.3} parent=11 // pred_check_branch
          %154 = sbr.rel (%p152) target = $region20
        $region19: #{cnn_block.3} parent=11 // pred_region
          %s156 = ssub.s32 16, 16
          %157 = vsyncadd [#allocation6], %s156
          %s159 = sshll.u32 [#allocation7], 4
          %s160 = int_to_ptr.vmem [resolvable:$true] %s159
          %162 = dma.hbm_to_vmem [thread:$0]  %s2, 16, %s160, [#allocation6]
        $region20: #{cnn_block.3} parent=11 // pred_fallthru
          _
      $region12: #{cnn_block.3} parent=5 // pred_fallthru
        _
      %p163 = scmp.lt.s32.totalorder %s16, 2
      // Predicated region
      $region21: #{cnn_block.3} parent=5 // pred_check
        %p164 = pneg %p163
      $region22: #{cnn_block.3} parent=5 // pred_check_branch
        %166 = sbr.rel (%p164) target = $region24
      $region23: #{cnn_block.3} parent=5 // pred_region
        // Predicated region
        $region25: #{cnn_block.3} parent=23 // pred_check
          %p167 = pneg %p50
        $region26: #{cnn_block.3} parent=23 // pred_check_branch
          %169 = sbr.rel (%p167) target = $region28
        $region27: #{cnn_block.3} parent=23 // pred_region
          %s170 = sand.u32 %s40, 1
          %s171 = scalar_lea.sflag [#allocation3], %s170
          %s172 = sand.u32 %s40, 1
          %s173 = smul.addr %s172, 128
          %s174 = scalar_lea.vmem [#allocation2], %s173
          %s175 = smul.u32 16, %s24
          %s177 = ssub.s32 2048, 2048
          %178 = vsyncadd %s171, %s177
          %s179 = smul.addr %s175, 2
          %s180 = smul.addr %s23, 32
          %s181 = sadd.s32 %s179, %s180
          %s182 = smul.addr %s181, 64
          %s183 = scalar_lea.hbm %s0, %s182
          %s184 = sshll.u32 %s174, 4
          %s185 = int_to_ptr.vmem [resolvable:$true] %s184
          %190 = dma.hbm_to_vmem [thread:$0]  %s183, 2048, %s185, %s171, 64, 64, 4
        $region28: #{cnn_block.3} parent=23 // pred_fallthru
          _
      $region24: #{cnn_block.3} parent=5 // pred_fallthru
        _
      %p191 = scmp.le.s32.totalorder 1, %s16
      %p192 = scmp.lt.s32.totalorder %s16, 3
      %p193 = pnand %p191, %p192
      %p194 = pneg %p193
      // Predicated region
      $region29: #{cnn_block.3} parent=5 // pred_check
        _
      $region30: #{cnn_block.3} parent=5 // pred_check_branch
        %196 = sbr.rel (%p193) target = $region32
      $region31: #{cnn_block.3} parent=5 // pred_region
        %s197 = ssub.s32 %s16, 1
        %s198 = sand.u32 %s43, 1
        %s199 = scalar_lea.sflag [#allocation3], %s198
        %s200 = sand.u32 %s43, 1
        %s201 = smul.addr %s200, 128
        %s202 = scalar_lea.vmem [#allocation2], %s201
        // Predicated region
        $region33: #{cnn_block.3} parent=31 // pred_check
          %p203 = pneg %p56
        $region34: #{cnn_block.3} parent=31 // pred_check_branch
          %205 = sbr.rel (%p203) target = $region36
        $region35: #{cnn_block.3} parent=31 // pred_region
          %206 = dma.done %s199, 2048
        $region36: #{cnn_block.3} parent=31 // pred_fallthru
          _
        // Predicated region
        $region37: #{cnn_block.3} parent=31 // pred_check
          %p207 = pneg %p77
        $region38: #{cnn_block.3} parent=31 // pred_check_branch
          %209 = sbr.rel (%p207) target = $region40
        $region39: #{cnn_block.3} parent=31 // pred_region
          %210 = dma.done [#allocation6], 16
        $region40: #{cnn_block.3} parent=31 // pred_fallthru
          _
        // Predicated region
        $region41: #{cnn_block.3} parent=31 // pred_check
          %p211 = pneg %p98
        $region42: #{cnn_block.3} parent=31 // pred_check_branch
          %213 = sbr.rel (%p211) target = $region44
        $region43: #{cnn_block.3} parent=31 // pred_region
          %214 = dma.done [#allocation6], 16
        $region44: #{cnn_block.3} parent=31 // pred_fallthru
          _
        %s215 = sand.u32 %s43, 1
        %s216 = scalar_lea.sflag [#allocation3], %s215
        %s217 = sand.u32 %s43, 1
        %s218 = smul.addr %s217, 128
        %s219 = scalar_lea.vmem [#allocation2], %s218
        %p220 = pneg %p56
        %p221 = pneg %p53
        %p222 = pneg %p77
        %p223 = pneg %p74
        %p224 = pneg %p98
        %p225 = pneg %p95
        %p226 = pneg %p126
        %p227 = pneg %p123
        %s228 = sand.u32 %s113, 1
        %s229 = scalar_lea.sflag [#allocation4], %s228
        %s230 = sand.u32 %s113, 1
        %s231 = smul.addr %s230, 256
        %s232 = scalar_lea.vmem [#allocation8], %s231
        %s233 = smul.u32 16, %s26
        %s234 = smul.u32 16, %s26
        %v235 = vld [vmem:[%s202] sm:$0xf]
        %v236 = vld [vmem:[%s202 + $0x4] sm:$0xf]
        %v237 = vld [vmem:[%s202 + $0x8] sm:$0xf]
        %v238 = vld [vmem:[%s202 + $0xc] sm:$0xf]
        %v239 = vld [vmem:[%s202 + $0x10] sm:$0xf]
        %v240 = vld [vmem:[%s202 + $0x14] sm:$0xf]
        %v241 = vld [vmem:[%s202 + $0x18] sm:$0xf]
        %v242 = vld [vmem:[%s202 + $0x1c] sm:$0xf]
        %v243 = vld [vmem:[%s202 + $0x20] sm:$0xf]
        %v244 = vld [vmem:[%s202 + $0x24] sm:$0xf]
        %v245 = vld [vmem:[%s202 + $0x28] sm:$0xf]
        %v246 = vld [vmem:[%s202 + $0x2c] sm:$0xf]
        %v247 = vld [vmem:[%s202 + $0x30] sm:$0xf]
        %v248 = vld [vmem:[%s202 + $0x34] sm:$0xf]
        %v249 = vld [vmem:[%s202 + $0x38] sm:$0xf]
        %v250 = vld [vmem:[%s202 + $0x3c] sm:$0xf]
        %v251 = vld [vmem:[%s202 + $0x40] sm:$0xf]
        %v252 = vld [vmem:[%s202 + $0x44] sm:$0xf]
        %v253 = vld [vmem:[%s202 + $0x48] sm:$0xf]
        %v254 = vld [vmem:[%s202 + $0x4c] sm:$0xf]
        %v255 = vld [vmem:[%s202 + $0x50] sm:$0xf]
        %v256 = vld [vmem:[%s202 + $0x54] sm:$0xf]
        %v257 = vld [vmem:[%s202 + $0x58] sm:$0xf]
        %v258 = vld [vmem:[%s202 + $0x5c] sm:$0xf]
        %v259 = vld [vmem:[%s202 + $0x60] sm:$0xf]
        %v260 = vld [vmem:[%s202 + $0x64] sm:$0xf]
        %v261 = vld [vmem:[%s202 + $0x68] sm:$0xf]
        %v262 = vld [vmem:[%s202 + $0x6c] sm:$0xf]
        %v263 = vld [vmem:[%s202 + $0x70] sm:$0xf]
        %v264 = vld [vmem:[%s202 + $0x74] sm:$0xf]
        %v265 = vld [vmem:[%s202 + $0x78] sm:$0xf]
        %v266 = vld [vmem:[%s202 + $0x7c] sm:$0xf]
        %v267 = vunpack.c.l.bf16 %v235
        %v268 = vunpack.c.l.bf16 %v236
        %v269 = vunpack.c.l.bf16 %v237
        %v270 = vunpack.c.l.bf16 %v238
        %v271 = vunpack.c.l.bf16 %v239
        %v272 = vunpack.c.l.bf16 %v240
        %v273 = vunpack.c.l.bf16 %v241
        %v274 = vunpack.c.l.bf16 %v242
        %v275 = vunpack.c.l.bf16 %v243
        %v276 = vunpack.c.l.bf16 %v244
        %v277 = vunpack.c.l.bf16 %v245
        %v278 = vunpack.c.l.bf16 %v246
        %v279 = vunpack.c.l.bf16 %v247
        %v280 = vunpack.c.l.bf16 %v248
        %v281 = vunpack.c.l.bf16 %v249
        %v282 = vunpack.c.l.bf16 %v250
        %v283 = vunpack.c.l.bf16 %v251
        %v284 = vunpack.c.l.bf16 %v252
        %v285 = vunpack.c.l.bf16 %v253
        %v286 = vunpack.c.l.bf16 %v254
        %v287 = vunpack.c.l.bf16 %v255
        %v288 = vunpack.c.l.bf16 %v256
        %v289 = vunpack.c.l.bf16 %v257
        %v290 = vunpack.c.l.bf16 %v258
        %v291 = vunpack.c.l.bf16 %v259
        %v292 = vunpack.c.l.bf16 %v260
        %v293 = vunpack.c.l.bf16 %v261
        %v294 = vunpack.c.l.bf16 %v262
        %v295 = vunpack.c.l.bf16 %v263
        %v296 = vunpack.c.l.bf16 %v264
        %v297 = vunpack.c.l.bf16 %v265
        %v298 = vunpack.c.l.bf16 %v266
        %v299 = vld [vmem:[#allocation5] sm:$0x1]
        %v301 = vlaneseq
        %v302 = vshrl.u32 %v301, 7
        %v303 = vsub.s32 0, %v302
        %v304 = vrot.slane %v299, %v303
        %v306 = vmul.f32 %v267, %v304
        %v307 = vmul.f32 %v268, %v304
        %v308 = vmul.f32 %v269, %v304
        %v309 = vmul.f32 %v270, %v304
        %v310 = vmul.f32 %v271, %v304
        %v311 = vmul.f32 %v272, %v304
        %v312 = vmul.f32 %v273, %v304
        %v313 = vmul.f32 %v274, %v304
        %v314 = vmul.f32 %v275, %v304
        %v315 = vmul.f32 %v276, %v304
        %v316 = vmul.f32 %v277, %v304
        %v317 = vmul.f32 %v278, %v304
        %v318 = vmul.f32 %v279, %v304
        %v319 = vmul.f32 %v280, %v304
        %v320 = vmul.f32 %v281, %v304
        %v321 = vmul.f32 %v282, %v304
        %v322 = vmul.f32 %v283, %v304
        %v323 = vmul.f32 %v284, %v304
        %v324 = vmul.f32 %v285, %v304
        %v325 = vmul.f32 %v286, %v304
        %v326 = vmul.f32 %v287, %v304
        %v327 = vmul.f32 %v288, %v304
        %v328 = vmul.f32 %v289, %v304
        %v329 = vmul.f32 %v290, %v304
        %v330 = vmul.f32 %v291, %v304
        %v331 = vmul.f32 %v292, %v304
        %v332 = vmul.f32 %v293, %v304
        %v333 = vmul.f32 %v294, %v304
        %v334 = vmul.f32 %v295, %v304
        %v335 = vmul.f32 %v296, %v304
        %v336 = vmul.f32 %v297, %v304
        %v337 = vmul.f32 %v298, %v304
        %v338 = vld [vmem:[#allocation7] sm:$0x1]
        %v340 = vlaneseq
        %v341 = vshrl.u32 %v340, 7
        %v342 = vsub.s32 0, %v341
        %v343 = vrot.slane %v338, %v342
        %v345 = vadd.f32 %v306, %v343
        %v346 = vadd.f32 %v307, %v343
        %v347 = vadd.f32 %v308, %v343
        %v348 = vadd.f32 %v309, %v343
        %v349 = vadd.f32 %v310, %v343
        %v350 = vadd.f32 %v311, %v343
        %v351 = vadd.f32 %v312, %v343
        %v352 = vadd.f32 %v313, %v343
        %v353 = vadd.f32 %v314, %v343
        %v354 = vadd.f32 %v315, %v343
        %v355 = vadd.f32 %v316, %v343
        %v356 = vadd.f32 %v317, %v343
        %v357 = vadd.f32 %v318, %v343
        %v358 = vadd.f32 %v319, %v343
        %v359 = vadd.f32 %v320, %v343
        %v360 = vadd.f32 %v321, %v343
        %v361 = vadd.f32 %v322, %v343
        %v362 = vadd.f32 %v323, %v343
        %v363 = vadd.f32 %v324, %v343
        %v364 = vadd.f32 %v325, %v343
        %v365 = vadd.f32 %v326, %v343
        %v366 = vadd.f32 %v327, %v343
        %v367 = vadd.f32 %v328, %v343
        %v368 = vadd.f32 %v329, %v343
        %v369 = vadd.f32 %v330, %v343
        %v370 = vadd.f32 %v331, %v343
        %v371 = vadd.f32 %v332, %v343
        %v372 = vadd.f32 %v333, %v343
        %v373 = vadd.f32 %v334, %v343
        %v374 = vadd.f32 %v335, %v343
        %v375 = vadd.f32 %v336, %v343
        %v376 = vadd.f32 %v337, %v343
        %vm377 = vcmp.ge.f32.partialorder %v345, 0.0
        %vm378 = vcmp.ge.f32.partialorder %v346, 0.0
        %vm379 = vcmp.ge.f32.partialorder %v347, 0.0
        %vm380 = vcmp.ge.f32.partialorder %v348, 0.0
        %vm381 = vcmp.ge.f32.partialorder %v349, 0.0
        %vm382 = vcmp.ge.f32.partialorder %v350, 0.0
        %vm383 = vcmp.ge.f32.partialorder %v351, 0.0
        %vm384 = vcmp.ge.f32.partialorder %v352, 0.0
        %vm385 = vcmp.ge.f32.partialorder %v353, 0.0
        %vm386 = vcmp.ge.f32.partialorder %v354, 0.0
        %vm387 = vcmp.ge.f32.partialorder %v355, 0.0
        %vm388 = vcmp.ge.f32.partialorder %v356, 0.0
        %vm389 = vcmp.ge.f32.partialorder %v357, 0.0
        %vm390 = vcmp.ge.f32.partialorder %v358, 0.0
        %vm391 = vcmp.ge.f32.partialorder %v359, 0.0
        %vm392 = vcmp.ge.f32.partialorder %v360, 0.0
        %vm393 = vcmp.ge.f32.partialorder %v361, 0.0
        %vm394 = vcmp.ge.f32.partialorder %v362, 0.0
        %vm395 = vcmp.ge.f32.partialorder %v363, 0.0
        %vm396 = vcmp.ge.f32.partialorder %v364, 0.0
        %vm397 = vcmp.ge.f32.partialorder %v365, 0.0
        %vm398 = vcmp.ge.f32.partialorder %v366, 0.0
        %vm399 = vcmp.ge.f32.partialorder %v367, 0.0
        %vm400 = vcmp.ge.f32.partialorder %v368, 0.0
        %vm401 = vcmp.ge.f32.partialorder %v369, 0.0
        %vm402 = vcmp.ge.f32.partialorder %v370, 0.0
        %vm403 = vcmp.ge.f32.partialorder %v371, 0.0
        %vm404 = vcmp.ge.f32.partialorder %v372, 0.0
        %vm405 = vcmp.ge.f32.partialorder %v373, 0.0
        %vm406 = vcmp.ge.f32.partialorder %v374, 0.0
        %vm407 = vcmp.ge.f32.partialorder %v375, 0.0
        %vm408 = vcmp.ge.f32.partialorder %v376, 0.0
        %v409 = vmul.f32 %v345, 0.1
        %v410 = vmul.f32 %v346, 0.1
        %v411 = vmul.f32 %v347, 0.1
        %v412 = vmul.f32 %v348, 0.1
        %v413 = vmul.f32 %v349, 0.1
        %v414 = vmul.f32 %v350, 0.1
        %v415 = vmul.f32 %v351, 0.1
        %v416 = vmul.f32 %v352, 0.1
        %v417 = vmul.f32 %v353, 0.1
        %v418 = vmul.f32 %v354, 0.1
        %v419 = vmul.f32 %v355, 0.1
        %v420 = vmul.f32 %v356, 0.1
        %v421 = vmul.f32 %v357, 0.1
        %v422 = vmul.f32 %v358, 0.1
        %v423 = vmul.f32 %v359, 0.1
        %v424 = vmul.f32 %v360, 0.1
        %v425 = vmul.f32 %v361, 0.1
        %v426 = vmul.f32 %v362, 0.1
        %v427 = vmul.f32 %v363, 0.1
        %v428 = vmul.f32 %v364, 0.1
        %v429 = vmul.f32 %v365, 0.1
        %v430 = vmul.f32 %v366, 0.1
        %v431 = vmul.f32 %v367, 0.1
        %v432 = vmul.f32 %v368, 0.1
        %v433 = vmul.f32 %v369, 0.1
        %v434 = vmul.f32 %v370, 0.1
        %v435 = vmul.f32 %v371, 0.1
        %v436 = vmul.f32 %v372, 0.1
        %v437 = vmul.f32 %v373, 0.1
        %v438 = vmul.f32 %v374, 0.1
        %v439 = vmul.f32 %v375, 0.1
        %v440 = vmul.f32 %v376, 0.1
        %v441 = vsel %vm377, %v345, %v409
        %v442 = vsel %vm378, %v346, %v410
        %v443 = vsel %vm379, %v347, %v411
        %v444 = vsel %vm380, %v348, %v412
        %v445 = vsel %vm381, %v349, %v413
        %v446 = vsel %vm382, %v350, %v414
        %v447 = vsel %vm383, %v351, %v415
        %v448 = vsel %vm384, %v352, %v416
        %v449 = vsel %vm385, %v353, %v417
        %v450 = vsel %vm386, %v354, %v418
        %v451 = vsel %vm387, %v355, %v419
        %v452 = vsel %vm388, %v356, %v420
        %v453 = vsel %vm389, %v357, %v421
        %v454 = vsel %vm390, %v358, %v422
        %v455 = vsel %vm391, %v359, %v423
        %v456 = vsel %vm392, %v360, %v424
        %v457 = vsel %vm393, %v361, %v425
        %v458 = vsel %vm394, %v362, %v426
        %v459 = vsel %vm395, %v363, %v427
        %v460 = vsel %vm396, %v364, %v428
        %v461 = vsel %vm397, %v365, %v429
        %v462 = vsel %vm398, %v366, %v430
        %v463 = vsel %vm399, %v367, %v431
        %v464 = vsel %vm400, %v368, %v432
        %v465 = vsel %vm401, %v369, %v433
        %v466 = vsel %vm402, %v370, %v434
        %v467 = vsel %vm403, %v371, %v435
        %v468 = vsel %vm404, %v372, %v436
        %v469 = vsel %vm405, %v373, %v437
        %v470 = vsel %vm406, %v374, %v438
        %v471 = vsel %vm407, %v375, %v439
        %v472 = vsel %vm408, %v376, %v440
        %vm473 = vcmask 64512
        %474 = vst.msk [vmem:[%s232] sm:$0xff] %vm473, %v441
        %475 = vst.msk [vmem:[%s232 + $0x8] sm:$0xff] %vm473, %v442
        %476 = vst.msk [vmem:[%s232 + $0x10] sm:$0xff] %vm473, %v443
        %477 = vst.msk [vmem:[%s232 + $0x18] sm:$0xff] %vm473, %v444
        %478 = vst.msk [vmem:[%s232 + $0x20] sm:$0xff] %vm473, %v445
        %479 = vst.msk [vmem:[%s232 + $0x28] sm:$0xff] %vm473, %v446
        %480 = vst.msk [vmem:[%s232 + $0x30] sm:$0xff] %vm473, %v447
        %481 = vst.msk [vmem:[%s232 + $0x38] sm:$0xff] %vm473, %v448
        %482 = vst.msk [vmem:[%s232 + $0x40] sm:$0xff] %vm473, %v449
        %483 = vst.msk [vmem:[%s232 + $0x48] sm:$0xff] %vm473, %v450
        %484 = vst.msk [vmem:[%s232 + $0x50] sm:$0xff] %vm473, %v451
        %485 = vst.msk [vmem:[%s232 + $0x58] sm:$0xff] %vm473, %v452
        %486 = vst.msk [vmem:[%s232 + $0x60] sm:$0xff] %vm473, %v453
        %487 = vst.msk [vmem:[%s232 + $0x68] sm:$0xff] %vm473, %v454
        %488 = vst.msk [vmem:[%s232 + $0x70] sm:$0xff] %vm473, %v455
        %489 = vst.msk [vmem:[%s232 + $0x78] sm:$0xff] %vm473, %v456
        %490 = vst.msk [vmem:[%s232 + $0x80] sm:$0xff] %vm473, %v457
        %491 = vst.msk [vmem:[%s232 + $0x88] sm:$0xff] %vm473, %v458
        %492 = vst.msk [vmem:[%s232 + $0x90] sm:$0xff] %vm473, %v459
        %493 = vst.msk [vmem:[%s232 + $0x98] sm:$0xff] %vm473, %v460
        %494 = vst.msk [vmem:[%s232 + $0xa0] sm:$0xff] %vm473, %v461
        %495 = vst.msk [vmem:[%s232 + $0xa8] sm:$0xff] %vm473, %v462
        %496 = vst.msk [vmem:[%s232 + $0xb0] sm:$0xff] %vm473, %v463
        %497 = vst.msk [vmem:[%s232 + $0xb8] sm:$0xff] %vm473, %v464
        %498 = vst.msk [vmem:[%s232 + $0xc0] sm:$0xff] %vm473, %v465
        %499 = vst.msk [vmem:[%s232 + $0xc8] sm:$0xff] %vm473, %v466
        %500 = vst.msk [vmem:[%s232 + $0xd0] sm:$0xff] %vm473, %v467
        %501 = vst.msk [vmem:[%s232 + $0xd8] sm:$0xff] %vm473, %v468
        %502 = vst.msk [vmem:[%s232 + $0xe0] sm:$0xff] %vm473, %v469
        %503 = vst.msk [vmem:[%s232 + $0xe8] sm:$0xff] %vm473, %v470
        %504 = vst.msk [vmem:[%s232 + $0xf0] sm:$0xff] %vm473, %v471
        %505 = vst.msk [vmem:[%s232 + $0xf8] sm:$0xff] %vm473, %v472
        %s506 = sand.u32 %s113, 1
        %s507 = scalar_lea.sflag [#allocation4], %s506
        %s508 = sand.u32 %s113, 1
        %s509 = smul.addr %s508, 256
        %s510 = scalar_lea.vmem [#allocation8], %s509
        // Predicated region
        $region45: #{cnn_block.3} parent=31 // pred_check
          %p511 = pneg %p123
        $region46: #{cnn_block.3} parent=31 // pred_check_branch
          %513 = sbr.rel (%p511) target = $region48
        $region47: #{cnn_block.3} parent=31 // pred_region
          %s514 = smul.u32 16, %s26
          %s516 = ssub.s32 4096, 4096
          %517 = vsyncadd %s507, %s516
          %s518 = smul.addr %s514, 2
          %s519 = smul.addr %s25, 32
          %s520 = sadd.s32 %s518, %s519
          %s521 = smul.addr %s520, 128
          %s522 = scalar_lea.hbm %s3, %s521
          %s523 = sshll.u32 %s510, 4
          %s524 = int_to_ptr.vmem [resolvable:$true] %s523
          %529 = dma.vmem_to_hbm [thread:$0]  %s524, 4096, %s522, %s507, 128, 128, 8
        $region48: #{cnn_block.3} parent=31 // pred_fallthru
          _
      $region32: #{cnn_block.3} parent=5 // pred_fallthru
        _
      %p530 = scmp.le.s32.totalorder 2, %s16
      // Predicated region
      $region49: #{cnn_block.3} parent=5 // pred_check
        %p531 = pneg %p530
      $region50: #{cnn_block.3} parent=5 // pred_check_branch
        %533 = sbr.rel (%p531) target = $region52
      $region51: #{cnn_block.3} parent=5 // pred_region
        %s534 = ssub.s32 %s16, 2
        // Predicated region
        $region53: #{cnn_block.3} parent=51 // pred_check
          %p535 = pneg %p129
        $region54: #{cnn_block.3} parent=51 // pred_check_branch
          %537 = sbr.rel (%p535) target = $region56
        $region55: #{cnn_block.3} parent=51 // pred_region
          %s538 = sand.u32 %s114, 1
          %s539 = scalar_lea.sflag [#allocation4], %s538
          %s540 = sand.u32 %s114, 1
          %s541 = smul.addr %s540, 256
          %s542 = scalar_lea.vmem [#allocation8], %s541
          %543 = dma.done %s539, 4096
        $region56: #{cnn_block.3} parent=51 // pred_fallthru
          _
      $region52: #{cnn_block.3} parent=5 // pred_fallthru
        _
    $region6: #{cnn_block.3} parent=1 // loop_footer
      %s20 = sadd.s32 1, %s16
    $region7: #{cnn_block.3} parent=1 // loop_footer_branch
      %15 = sbr.rel target = $region3
    $region8: #{cnn_block.3} parent=1 // loop_exit
      _
    %544 = vsyncpa [#allocation3], 1
    %s545 = scalar_lea.sflag [#allocation3], 1
    %546 = vsyncpa %s545, 1
    %547 = vsyncpa [#allocation6], 1
    %548 = vsyncpa [#allocation4], 1
    %s549 = scalar_lea.sflag [#allocation4], 1
    %550 = vsyncpa %s549, 1

// kernel: cnn_block.2
$region0: #{cnn_block.2}
  #allocation0 [shape = 'u32[]', space=smem, size = 0x4, offset = 0x4, fixed_abs, tag = 'smem constant byte address 0x4 - core index']
  #allocation1 [shape = 'u32[144,128]{1,0:T(1,128)}', space=vmem, size = 0x12000, scoped, tag = 'internal scratch']
  %s0 = inlined_call_operand.hbm [shape: bf16[2,18,18,8], index: 0, kind: input, shape index: {}]
  %s1 = inlined_call_operand.hbm [shape: bf16[72,128], index: 1, kind: input, shape index: {}]
  %s2 = inlined_call_operand.hbm [shape: bf16[2,16,16,8], index: 2, kind: output, shape index: {0}]
  %s3 = inlined_call_operand.hbm [shape: f32[2,2,2,128], index: 3, kind: output, shape index: {1}]
  %4 = xla_tuple %s2, %s3
  %s5 = sld [smem:[#allocation0]]
  $region57: #{cnn_block.2} parent=0
    _
  %s7 = ssub.s32 1, %s5
  %s8 = scalar_select 0, %s7, %s5
  $region1: #{cnn_block.2} parent=0
    #allocation2 [shape = 'u8[221184]{0}', space=vmem, size = 0x36000, scoped, tag = 'input window, operand 0']
    #allocation3 [shape = 's32[2]{0}', space=sflag, size = 0x8, scoped, tag = 'scoped memory for cnn_block.2']
    #allocation4 [shape = 's32[2]{0}', space=sflag, size = 0x8, scoped, tag = 'scoped memory for cnn_block.2']
    #allocation5 [shape = 'u8[18432]{0}', space=vmem, size = 0x4800, scoped, tag = 'input window, operand 1, single buffered']
    #allocation6 [shape = 's32[1]{0}', space=sflag, size = 0x4, scoped, tag = 'scoped memory for cnn_block.2']
    #allocation7 [shape = 'u8[65536]{0}', space=vmem, size = 0x10000, scoped, tag = 'output window, operand 0']
    #allocation8 [shape = 'u8[2048]{0}', space=vmem, size = 0x800, scoped, tag = 'output window, operand 1']
    #allocation9 [shape = 's32[2]{0}', space=sflag, size = 0x8, scoped, tag = 'scoped memory for cnn_block.2']
    %9 = vsyncpa [#allocation3], 0
    %s10 = scalar_lea.sflag [#allocation3], 1
    %11 = vsyncpa %s10, 0
    %12 = vsyncpa [#allocation6], 0
    %13 = vsyncpa [#allocation4], 0
    %s14 = scalar_lea.sflag [#allocation4], 1
    %15 = vsyncpa %s14, 0
    %16 = vsyncpa [#allocation9], 0
    %s17 = scalar_lea.sflag [#allocation9], 1
    %18 = vsyncpa %s17, 0
    loop: start=0, step=1, limit=6
    $region2: #{cnn_block.2} parent=1 // loop_pre_header
      _
    $region3: #{cnn_block.2} parent=1 // loop_header
      %s20 = sphi 0, %s24
      %p21 = scmp.ge.s32.totalorder %s20, 6
      %s27 = sphi 0, %s39
      %s28 = sphi 0, %s35
      %s29 = sphi 0, %s27
      %s30 = sphi 0, %s28
      %s31 = sphi 0, %s29
      %s32 = sphi 0, %s30
      %s42 = sphi 0, %s44
      %s45 = sphi 0, %s42
      %s46 = sphi 0, %s45
      %s62 = sphi 0, %s46
      %s66 = sphi 0, %s66
      %s68 = sphi 0, %s66
      %s69 = sphi 0, %s68
      %s83 = sphi 0, %s69
      %s91 = sphi 0, %s93
      %s94 = sphi 0, %s91
      %s95 = sphi 0, %s94
      %s111 = sphi 0, %s95
      %s119 = sphi 0, %s121
      %s122 = sphi 0, %s119
      %s123 = sphi 0, %s122
      %s139 = sphi 0, %s123
    $region4: #{cnn_block.2} parent=1 // loop_header_branch
      %23 = sbr.rel (%p21) target = $region8
    $region5: #{cnn_block.2} parent=1 // loop_body
      %s25 = ssub.s32 %s20, 1
      %s26 = ssub.s32 %s20, 2
      %s33 = sadd.s32 1, %s28
      %p34 = scmp.ge.s32.totalorder %s33, 2
      %s35 = scalar_select %p34, 0, %s33
      %s36 = sadd.s32 1, %s27
      %s37 = scalar_select %p34, %s36, %s27
      %p38 = scmp.ge.s32.totalorder %s37, 2
      %s39 = scalar_select %p38, 0, %s37
      %s40 = ssub.s32 %s27, %s39
      %p41 = scmp.eq.s32.totalorder %s40, 0
      %s43 = sadd.s32 %s42, 1
      %s44 = scalar_select %p41, %s42, %s43
      %p47 = pneg %p41
      %p48 = scmp.eq.s32.totalorder %s20, 3
      %p49 = por %p47, %p48
      %p50 = scmp.ne.s32.totalorder %s42, %s45
      %p51 = scmp.eq.s32.totalorder %s20, 0
      %p52 = por %p50, %p51
      %p53 = scmp.ne.s32.totalorder %s42, %s45
      %p54 = scmp.eq.s32.totalorder %s25, 3
      %p55 = por %p53, %p54
      %p56 = scmp.ne.s32.totalorder %s45, %s46
      %p57 = scmp.eq.s32.totalorder %s25, 0
      %p58 = por %p56, %p57
      %p59 = scmp.ne.s32.totalorder %s45, %s46
      %p60 = scmp.eq.s32.totalorder %s26, 3
      %p61 = por %p59, %p60
      %p63 = scmp.ne.s32.totalorder %s46, %s62
      %p64 = scmp.eq.s32.totalorder %s26, 0
      %p65 = por %p63, %p64
      %s67 = sadd.s32 %s66, 1
      %p70 = scmp.eq.s32.totalorder %s20, 3
      %p71 = scmp.ne.s32.totalorder %s66, %s68
      %p72 = scmp.eq.s32.totalorder %s20, 0
      %p73 = por %p71, %p72
      %p74 = scmp.ne.s32.totalorder %s66, %s68
      %p75 = scmp.eq.s32.totalorder %s25, 3
      %p76 = por %p74, %p75
      %p77 = scmp.ne.s32.totalorder %s68, %s69
      %p78 = scmp.eq.s32.totalorder %s25, 0
      %p79 = por %p77, %p78
      %p80 = scmp.ne.s32.totalorder %s68, %s69
      %p81 = scmp.eq.s32.totalorder %s26, 3
      %p82 = por %p80, %p81
      %p84 = scmp.ne.s32.totalorder %s69, %s83
      %p85 = scmp.eq.s32.totalorder %s26, 0
      %p86 = por %p84, %p85
      %s87 = ssub.s32 %s27, %s39
      %s88 = ssub.s32 %s28, %s35
      %s89 = sor.u32 %s87, %s88
      %p90 = scmp.eq.s32.totalorder %s89, 0
      %s92 = sadd.s32 %s91, 1
      %s93 = scalar_select %p90, %s91, %s92
      %p96 = pneg %p90
      %p97 = scmp.eq.s32.totalorder %s20, 3
      %p98 = por %p96, %p97
      %p99 = scmp.ne.s32.totalorder %s91, %s94
      %p100 = scmp.eq.s32.totalorder %s20, 0
      %p101 = por %p99, %p100
      %p102 = scmp.ne.s32.totalorder %s91, %s94
      %p103 = scmp.eq.s32.totalorder %s25, 3
      %p104 = por %p102, %p103
      %p105 = scmp.ne.s32.totalorder %s94, %s95
      %p106 = scmp.eq.s32.totalorder %s25, 0
      %p107 = por %p105, %p106
      %p108 = scmp.ne.s32.totalorder %s94, %s95
      %p109 = scmp.eq.s32.totalorder %s26, 3
      %p110 = por %p108, %p109
      %p112 = scmp.ne.s32.totalorder %s95, %s111
      %p113 = scmp.eq.s32.totalorder %s26, 0
      %p114 = por %p112, %p113
      %s115 = ssub.s32 %s27, %s39
      %s116 = ssub.s32 %s28, %s35
      %s117 = sor.u32 %s115, %s116
      %p118 = scmp.eq.s32.totalorder %s117, 0
      %s120 = sadd.s32 %s119, 1
      %s121 = scalar_select %p118, %s119, %s120
      %p124 = pneg %p118
      %p125 = scmp.eq.s32.totalorder %s20, 3
      %p126 = por %p124, %p125
      %p127 = scmp.ne.s32.totalorder %s119, %s122
      %p128 = scmp.eq.s32.totalorder %s20, 0
      %p129 = por %p127, %p128
      %p130 = scmp.ne.s32.totalorder %s119, %s122
      %p131 = scmp.eq.s32.totalorder %s25, 3
      %p132 = por %p130, %p131
      %p133 = scmp.ne.s32.totalorder %s122, %s123
      %p134 = scmp.eq.s32.totalorder %s25, 0
      %p135 = por %p133, %p134
      %p136 = scmp.ne.s32.totalorder %s122, %s123
      %p137 = scmp.eq.s32.totalorder %s26, 3
      %p138 = por %p136, %p137
      %p140 = scmp.ne.s32.totalorder %s123, %s139
      %p141 = scmp.eq.s32.totalorder %s26, 0
      %p142 = por %p140, %p141
      %p143 = scmp.le.s32.totalorder 1, %s20
      %p144 = scmp.lt.s32.totalorder %s20, 5
      %p145 = pnand %p143, %p144
      %p146 = pneg %p145
      // Predicated region
      $region9: #{cnn_block.2} parent=5 // pred_check
        _
      $region10: #{cnn_block.2} parent=5 // pred_check_branch
        %148 = sbr.rel (%p145) target = $region12
      $region11: #{cnn_block.2} parent=5 // pred_region
        %s149 = ssub.s32 %s20, 1
        // Predicated region
        $region13: #{cnn_block.2} parent=11 // pred_check
          %p150 = pneg %p79
        $region14: #{cnn_block.2} parent=11 // pred_check_branch
          %152 = sbr.rel (%p150) target = $region16
        $region15: #{cnn_block.2} parent=11 // pred_region
          %s154 = ssub.s32 576, 576
          %155 = vsyncadd [#allocation6], %s154
          %s156 = sshll.u32 [#allocation5], 4
          %s157 = int_to_ptr.vmem [resolvable:$true] %s156
          %162 = dma.hbm_to_vmem [thread:$0]  %s1, 576, %s157, [#allocation6], 64, 64, 4
        $region16: #{cnn_block.2} parent=11 // pred_fallthru
          _
      $region12: #{cnn_block.2} parent=5 // pred_fallthru
        _
      %p163 = scmp.lt.s32.totalorder %s20, 4
      // Predicated region
      $region17: #{cnn_block.2} parent=5 // pred_check
        %p164 = pneg %p163
      $region18: #{cnn_block.2} parent=5 // pred_check_branch
        %166 = sbr.rel (%p164) target = $region20
      $region19: #{cnn_block.2} parent=5 // pred_region
        // Predicated region
        $region21: #{cnn_block.2} parent=19 // pred_check
          %p167 = pneg %p52
        $region22: #{cnn_block.2} parent=19 // pred_check_branch
          %169 = sbr.rel (%p167) target = $region24
        $region23: #{cnn_block.2} parent=19 // pred_region
          %s170 = sand.u32 %s42, 1
          %s171 = scalar_lea.sflag [#allocation3], %s170
          %s172 = sand.u32 %s42, 1
          %s173 = smul.addr %s172, 216
          %s174 = scalar_lea.vmem [#allocation2], %s173
          %s176 = ssub.s32 3456, 3456
          %177 = vsyncadd %s171, %s176
          %s178 = smul.addr %s27, 54
          %s179 = smul.addr %s178, 64
          %s180 = scalar_lea.hbm %s0, %s179
          %s181 = sshll.u32 %s174, 4
          %s182 = int_to_ptr.vmem [resolvable:$true] %s181
          %187 = dma.hbm_to_vmem [thread:$0]  %s180, 3456, %s182, %s171, 64, 64, 4
        $region24: #{cnn_block.2} parent=19 // pred_fallthru
          _
      $region20: #{cnn_block.2} parent=5 // pred_fallthru
        _
      %p188 = scmp.le.s32.totalorder 1, %s20
      %p189 = scmp.lt.s32.totalorder %s20, 5
      %p190 = pnand %p188, %p189
      %p191 = pneg %p190
      // Predicated region
      $region25: #{cnn_block.2} parent=5 // pred_check
        _
      $region26: #{cnn_block.2} parent=5 // pred_check_branch
        %193 = sbr.rel (%p190) target = $region28
      $region27: #{cnn_block.2} parent=5 // pred_region
        %s194 = ssub.s32 %s20, 1
        %s195 = sand.u32 %s45, 1
        %s196 = scalar_lea.sflag [#allocation3], %s195
        %s197 = sand.u32 %s45, 1
        %s198 = smul.addr %s197, 216
        %s199 = scalar_lea.vmem [#allocation2], %s198
        // Predicated region
        $region29: #{cnn_block.2} parent=27 // pred_check
          %p200 = pneg %p58
        $region30: #{cnn_block.2} parent=27 // pred_check_branch
          %202 = sbr.rel (%p200) target = $region32
        $region31: #{cnn_block.2} parent=27 // pred_region
          %203 = dma.done %s196, 3456
        $region32: #{cnn_block.2} parent=27 // pred_fallthru
          _
        // Predicated region
        $region33: #{cnn_block.2} parent=27 // pred_check
          %p204 = pneg %p79
        $region34: #{cnn_block.2} parent=27 // pred_check_branch
          %206 = sbr.rel (%p204) target = $region36
        $region35: #{cnn_block.2} parent=27 // pred_region
          %207 = dma.done [#allocation6], 576
        $region36: #{cnn_block.2} parent=27 // pred_fallthru
          _
        %s208 = sand.u32 %s45, 1
        %s209 = scalar_lea.sflag [#allocation3], %s208
        %s210 = sand.u32 %s45, 1
        %s211 = smul.addr %s210, 216
        %s212 = scalar_lea.vmem [#allocation2], %s211
        %p213 = pneg %p58
        %p214 = pneg %p55
        %p215 = pneg %p79
        %p216 = pneg %p76
        %p217 = pneg %p107
        %p218 = pneg %p104
        %s219 = sand.u32 %s94, 1
        %s220 = scalar_lea.sflag [#allocation4], %s219
        %s221 = sand.u32 %s94, 1
        %s222 = smul.addr %s221, 64
        %s223 = scalar_lea.vmem [#allocation7], %s222
        %p224 = pneg %p135
        %p225 = pneg %p132
        %s226 = sand.u32 %s122, 1
        %s227 = scalar_lea.sflag [#allocation9], %s226
        %s228 = sand.u32 %s122, 1
        %s229 = smul.addr %s228, 2
        %s230 = scalar_lea.vmem [#allocation8], %s229
        %s231 = smul.u32 8, %s30
        %s233 = smul.u32 %s30, 8
        %s234 = smul.u32 %s233, 3
        %s235 = smul.addr %s234, 4
        %s236 = scalar_lea.vmem %s199, %s235 [#allocation2]
        %v237 = vld [vmem:[%s236] sm:$0xf]
        %v238 = vld [vmem:[%s236 + $0x4] sm:$0xf]
        %v239 = vld [vmem:[%s236 + $0x8] sm:$0x1]
        %v240 = vld [vmem:[%s236 + $0xc] sm:$0xf]
        %v241 = vld [vmem:[%s236 + $0x10] sm:$0xf]
        %v242 = vld [vmem:[%s236 + $0x14] sm:$0x1]
        %v243 = vld [vmem:[%s236 + $0x18] sm:$0xf]
        %v244 = vld [vmem:[%s236 + $0x1c] sm:$0xf]
        %v245 = vld [vmem:[%s236 + $0x20] sm:$0x1]
        %v246 = vld [vmem:[%s236 + $0x24] sm:$0xf]
        %v247 = vld [vmem:[%s236 + $0x28] sm:$0xf]
        %v248 = vld [vmem:[%s236 + $0x2c] sm:$0x1]
        %v249 = vld [vmem:[%s236 + $0x30] sm:$0xf]
        %v250 = vld [vmem:[%s236 + $0x34] sm:$0xf]
        %v251 = vld [vmem:[%s236 + $0x38] sm:$0x1]
        %v252 = vld [vmem:[%s236 + $0x3c] sm:$0xf]
        %v253 = vld [vmem:[%s236 + $0x40] sm:$0xf]
        %v254 = vld [vmem:[%s236 + $0x44] sm:$0x1]
        %v255 = vld [vmem:[%s236 + $0x48] sm:$0xf]
        %v256 = vld [vmem:[%s236 + $0x4c] sm:$0xf]
        %v257 = vld [vmem:[%s236 + $0x50] sm:$0x1]
        %v258 = vld [vmem:[%s236 + $0x54] sm:$0xf]
        %v259 = vld [vmem:[%s236 + $0x58] sm:$0xf]
        %v260 = vld [vmem:[%s236 + $0x5c] sm:$0x1]
        %v261 = vld [vmem:[%s236 + $0x60] sm:$0xf]
        %v262 = vld [vmem:[%s236 + $0x64] sm:$0xf]
        %v263 = vld [vmem:[%s236 + $0x68] sm:$0x1]
        %v264 = vld [vmem:[%s236 + $0x6c] sm:$0xf]
        %v265 = vld [vmem:[%s236 + $0x70] sm:$0xf]
        %v266 = vld [vmem:[%s236 + $0x74] sm:$0x1]
        %v267 = vld [vmem:[#allocation5] sm:$0xf]
        %v268 = vld [vmem:[#allocation5 + $0x4] sm:$0xf]
        %vm269 = vsmask.f32 3328
        %vm270 = vsmask.f32 7440
        %vm271 = vmor %vm269, %vm270
        %v273 = vshrl.u32 %v237, 16
        %v275 = vrot.slane %v273, 4
        %v276 = vshll.u32 %v237, 16
        %v278 = vrot.slane %v276, 5
        %v279 = vor.u32 %v275, %v278
        %v280 = vrot.slane %v279, 4
        %v282 = vshll.u32 %v238, 16
        %v284 = vrot.slane %v282, 5
        %v285 = vsel %vm271, %v280, %v284
        %v286 = vshrl.u32 %v238, 16
        %v288 = vrot.slane %v286, 4
        %v289 = vor.u32 %v288, %v284
        %v290 = vrot.slane %v289, 4
        %v292 = vshll.u32 %v239, 16
        %v294 = vrot.slane %v292, 5
        %v295 = vsel %vm271, %v290, %v294
        %v297 = vshrl.u32 %v240, 16
        %v299 = vrot.slane %v297, 4
        %v300 = vshll.u32 %v240, 16
        %v302 = vrot.slane %v300, 5
        %v303 = vor.u32 %v299, %v302
        %v304 = vrot.slane %v303, 4
        %v306 = vshll.u32 %v241, 16
        %v308 = vrot.slane %v306, 5
        %v309 = vsel %vm271, %v304, %v308
        %v310 = vshrl.u32 %v241, 16
        %v312 = vrot.slane %v310, 4
        %v313 = vor.u32 %v312, %v308
        %v314 = vrot.slane %v313, 4
        %v316 = vshll.u32 %v242, 16
        %v318 = vrot.slane %v316, 5
        %v319 = vsel %vm271, %v314, %v318
        %v321 = vshrl.u32 %v243, 16
        %v323 = vrot.slane %v321, 4
        %v324 = vshll.u32 %v243, 16
        %v326 = vrot.slane %v324, 5
        %v327 = vor.u32 %v323, %v326
        %v328 = vrot.slane %v327, 4
        %v330 = vshll.u32 %v244, 16
        %v332 = vrot.slane %v330, 5
        %v333 = vsel %vm271, %v328, %v332
        %v334 = vshrl.u32 %v244, 16
        %v336 = vrot.slane %v334, 4
        %v337 = vor.u32 %v336, %v332
        %v338 = vrot.slane %v337, 4
        %v340 = vshll.u32 %v245, 16
        %v342 = vrot.slane %v340, 5
        %v343 = vsel %vm271, %v338, %v342
        %v345 = vshrl.u32 %v246, 16
        %v347 = vrot.slane %v345, 4
        %v348 = vshll.u32 %v246, 16
        %v350 = vrot.slane %v348, 5
        %v351 = vor.u32 %v347, %v350
        %v352 = vrot.slane %v351, 4
        %v354 = vshll.u32 %v247, 16
        %v356 = vrot.slane %v354, 5
        %v357 = vsel %vm271, %v352, %v356
        %v358 = vshrl.u32 %v247, 16
        %v360 = vrot.slane %v358, 4
        %v361 = vor.u32 %v360, %v356
        %v362 = vrot.slane %v361, 4
        %v364 = vshll.u32 %v248, 16
        %v366 = vrot.slane %v364, 5
        %v367 = vsel %vm271, %v362, %v366
        %v369 = vshrl.u32 %v249, 16
        %v371 = vrot.slane %v369, 4
        %v372 = vshll.u32 %v249, 16
        %v374 = vrot.slane %v372, 5
        %v375 = vor.u32 %v371, %v374
        %v376 = vrot.slane %v375, 4
        %v378 = vshll.u32 %v250, 16
        %v380 = vrot.slane %v378, 5
        %v381 = vsel %vm271, %v376, %v380
        %v382 = vshrl.u32 %v250, 16
        %v384 = vrot.slane %v382, 4
        %v385 = vor.u32 %v384, %v380
        %v386 = vrot.slane %v385, 4
        %v388 = vshll.u32 %v251, 16
        %v390 = vrot.slane %v388, 5
        %v391 = vsel %vm271, %v386, %v390
        %v393 = vshrl.u32 %v252, 16
        %v395 = vrot.slane %v393, 4
        %v396 = vshll.u32 %v252, 16
        %v398 = vrot.slane %v396, 5
        %v399 = vor.u32 %v395, %v398
        %v400 = vrot.slane %v399, 4
        %v402 = vshll.u32 %v253, 16
        %v404 = vrot.slane %v402, 5
        %v405 = vsel %vm271, %v400, %v404
        %v406 = vshrl.u32 %v253, 16
        %v408 = vrot.slane %v406, 4
        %v409 = vor.u32 %v408, %v404
        %v410 = vrot.slane %v409, 4
        %v412 = vshll.u32 %v254, 16
        %v414 = vrot.slane %v412, 5
        %v415 = vsel %vm271, %v410, %v414
        %v417 = vshrl.u32 %v255, 16
        %v419 = vrot.slane %v417, 4
        %v420 = vshll.u32 %v255, 16
        %v422 = vrot.slane %v420, 5
        %v423 = vor.u32 %v419, %v422
        %v424 = vrot.slane %v423, 4
        %v426 = vshll.u32 %v256, 16
        %v428 = vrot.slane %v426, 5
        %v429 = vsel %vm271, %v424, %v428
        %v430 = vshrl.u32 %v256, 16
        %v432 = vrot.slane %v430, 4
        %v433 = vor.u32 %v432, %v428
        %v434 = vrot.slane %v433, 4
        %v436 = vshll.u32 %v257, 16
        %v438 = vrot.slane %v436, 5
        %v439 = vsel %vm271, %v434, %v438
        %v441 = vshrl.u32 %v258, 16
        %v443 = vrot.slane %v441, 4
        %v444 = vshll.u32 %v258, 16
        %v446 = vrot.slane %v444, 5
        %v447 = vor.u32 %v443, %v446
        %v448 = vrot.slane %v447, 4
        %v450 = vshll.u32 %v259, 16
        %v452 = vrot.slane %v450, 5
        %v453 = vsel %vm271, %v448, %v452
        %v454 = vshrl.u32 %v259, 16
        %v456 = vrot.slane %v454, 4
        %v457 = vor.u32 %v456, %v452
        %v458 = vrot.slane %v457, 4
        %v460 = vshll.u32 %v260, 16
        %v462 = vrot.slane %v460, 5
        %v463 = vsel %vm271, %v458, %v462
        %v464 = vunpack.c.l.b16 %v285
        %v465 = vunpack.c.l.b16 %v295
        %v466 = vunpack.c.l.b16 %v309
        %v467 = vunpack.c.l.b16 %v319
        %v468 = vunpack.c.l.b16 %v333
        %v469 = vunpack.c.l.b16 %v343
        %v470 = vunpack.c.l.b16 %v357
        %v471 = vunpack.c.l.b16 %v367
        %v472 = vunpack.c.l.b16 %v381
        %v473 = vunpack.c.l.b16 %v391
        %v474 = vunpack.c.l.b16 %v405
        %v475 = vunpack.c.l.b16 %v415
        %v476 = vunpack.c.l.b16 %v429
        %v477 = vunpack.c.l.b16 %v439
        %v478 = vunpack.c.l.b16 %v453
        %v479 = vunpack.c.l.b16 %v463
        %v480 = vpack.c.b16 %v465, %v464
        %v481 = vpack.c.b16 %v467, %v466
        %v482 = vpack.c.b16 %v469, %v468
        %v483 = vpack.c.b16 %v471, %v470
        %v484 = vpack.c.b16 %v473, %v472
        %v485 = vpack.c.b16 %v475, %v474
        %v486 = vpack.c.b16 %v477, %v476
        %v487 = vpack.c.b16 %v479, %v478
        %vm488 = vcmask 64512
        %v490 = vsel %vm488, %v480, 0
        %v493 = vsel %vm488, %v481, 0
        %v496 = vsel %vm488, %v482, 0
        %v499 = vsel %vm488, %v483, 0
        %v502 = vsel %vm488, %v484, 0
        %v505 = vsel %vm488, %v485, 0
        %v508 = vsel %vm488, %v486, 0
        %v511 = vsel %vm488, %v487, 0
        %vm513 = vcmask 1043456
        %v515 = vsel %vm513, %v268, 0
        %517 = vmatprep.subr.bf16.mxu0 0
        %518 = vmatpush1.bf16.msra.mxu0 %v515
        %519 = vmatprep.subr.bf16.mxu0 0
        %520 = vmatpush1.bf16.msra.mxu0 0
        %521 = vmatprep.subr.bf16.mxu0 0
        %522 = vmatpush1.bf16.msra.mxu0 0
        %523 = vmatprep.subr.bf16.mxu0 0
        %524 = vmatpush1.bf16.msra.mxu0 0
        %525 = vmatprep.subr.bf16.mxu0 0
        %526 = vmatpush1.bf16.msra.mxu0 0
        %527 = vmatprep.subr.bf16.mxu0 0
        %528 = vmatpush1.bf16.msra.mxu0 0
        %529 = vmatprep.subr.bf16.mxu0 0
        %530 = vmatpush1.bf16.msra.mxu0 0
        %531 = vmatprep.subr.bf16.mxu0 0
        %532 = vmatpush1.bf16.msra.mxu0 0
        %533 = vmatprep.subr.bf16.mxu0 0
        %534 = vmatpush1.bf16.msra.mxu0 0
        %535 = vmatprep.subr.bf16.mxu0 0
        %536 = vmatpush1.bf16.msra.mxu0 0
        %537 = vmatprep.subr.bf16.mxu0 0
        %538 = vmatpush1.bf16.msra.mxu0 0
        %539 = vmatprep.subr.bf16.mxu0 0
        %540 = vmatpush1.bf16.msra.mxu0 0
        %541 = vmatprep.subr.bf16.mxu0 0
        %542 = vmatpush1.bf16.msra.mxu0 0
        %543 = vmatprep.subr.bf16.mxu0 0
        %544 = vmatpush1.bf16.msra.mxu0 0
        %545 = vmatprep.subr.bf16.mxu0 0
        %546 = vmatpush1.bf16.msra.mxu0 0
        %547 = vmatprep.subr.bf16.mxu0 0
        %548 = vmatpush1.bf16.msra.mxu0 0
        %549 = vmatprep.mubr.bf16.mxu0 0
        %550 = vmatmul.mubr.bf16.gmra.mrb[0].mxu0 %v490
        %v551 = vpop.f32.mrb[0].mxu0
        %v552 = vadd.f32 0.0, %v551
        %v553 = vpop.f32.mrb[0].mxu0
        %v554 = vpop.f32.mrb[0].mxu0
        %v555 = vadd.f32 0.0, %v554
        %v556 = vpop.f32.mrb[0].mxu0
        %557 = vmatprep.mubr.bf16.mxu0 0
        %558 = vmatmul.mubr.bf16.gmra.mrb[0].mxu0 %v493
        %v559 = vpop.f32.mrb[0].mxu0
        %v560 = vadd.f32 0.0, %v559
        %v561 = vpop.f32.mrb[0].mxu0
        %v562 = vpop.f32.mrb[0].mxu0
        %v563 = vadd.f32 0.0, %v562
        %v564 = vpop.f32.mrb[0].mxu0
        %565 = vmatprep.mubr.bf16.mxu0 0
        %566 = vmatmul.mubr.bf16.gmra.mrb[0].mxu0 %v496
        %v567 = vpop.f32.mrb[0].mxu0
        %v568 = vadd.f32 0.0, %v567
        %v569 = vpop.f32.mrb[0].mxu0
        %v570 = vpop.f32.mrb[0].mxu0
        %v571 = vadd.f32 0.0, %v570
        %v572 = vpop.f32.mrb[0].mxu0
        %573 = vmatprep.mubr.bf16.mxu0 0
        %574 = vmatmul.mubr.bf16.gmra.mrb[0].mxu0 %v499
        %v575 = vpop.f32.mrb[0].mxu0
        %v576 = vadd.f32 0.0, %v575
        %v577 = vpop.f32.mrb[0].mxu0
        %v578 = vpop.f32.mrb[0].mxu0
        %v579 = vadd.f32 0.0, %v578
        %v580 = vpop.f32.mrb[0].mxu0
        %581 = vmatprep.mubr.bf16.mxu0 0
        %582 = vmatmul.mubr.bf16.gmra.mrb[0].mxu0 %v502
        %v583 = vpop.f32.mrb[0].mxu0
        %v584 = vadd.f32 0.0, %v583
        %v585 = vpop.f32.mrb[0].mxu0
        %v586 = vpop.f32.mrb[0].mxu0
        %v587 = vadd.f32 0.0, %v586
        %v588 = vpop.f32.mrb[0].mxu0
        %589 = vmatprep.mubr.bf16.mxu0 0
        %590 = vmatmul.mubr.bf16.gmra.mrb[0].mxu0 %v505
        %v591 = vpop.f32.mrb[0].mxu0
        %v592 = vadd.f32 0.0, %v591
        %v593 = vpop.f32.mrb[0].mxu0
        %v594 = vpop.f32.mrb[0].mxu0
        %v595 = vadd.f32 0.0, %v594
        %v596 = vpop.f32.mrb[0].mxu0
        %597 = vmatprep.mubr.bf16.mxu0 0
        %598 = vmatmul.mubr.bf16.gmra.mrb[0].mxu0 %v508
        %v599 = vpop.f32.mrb[0].mxu0
        %v600 = vadd.f32 0.0, %v599
        %v601 = vpop.f32.mrb[0].mxu0
        %v602 = vpop.f32.mrb[0].mxu0
        %v603 = vadd.f32 0.0, %v602
        %v604 = vpop.f32.mrb[0].mxu0
        %605 = vmatprep.mubr.bf16.mxu0 0
        %606 = vmatmul.mubr.bf16.gmra.mrb[0].mxu0 %v511
        %v607 = vpop.f32.mrb[0].mxu0
        %v608 = vadd.f32 0.0, %v607
        %v609 = vpop.f32.mrb[0].mxu0
        %v610 = vpop.f32.mrb[0].mxu0
        %v611 = vadd.f32 0.0, %v610
        %v612 = vpop.f32.mrb[0].mxu0
        %613 = vdwg.mxu0
        %v630 = vunpack.c.l.b16 %v237
        %v631 = vunpack.c.l.b16 %v238
        %v632 = vunpack.c.l.b16 %v240
        %v633 = vunpack.c.l.b16 %v241
        %v634 = vunpack.c.l.b16 %v243
        %v635 = vunpack.c.l.b16 %v244
        %v636 = vunpack.c.l.b16 %v246
        %v637 = vunpack.c.l.b16 %v247
        %v638 = vunpack.c.l.b16 %v249
        %v639 = vunpack.c.l.b16 %v250
        %v640 = vunpack.c.l.b16 %v252
        %v641 = vunpack.c.l.b16 %v253
        %v642 = vunpack.c.l.b16 %v255
        %v643 = vunpack.c.l.b16 %v256
        %v644 = vunpack.c.l.b16 %v258
        %v645 = vunpack.c.l.b16 %v259
        %v646 = vpack.c.b16 %v631, %v630
        %v647 = vpack.c.b16 %v633, %v632
        %v648 = vpack.c.b16 %v635, %v634
        %v649 = vpack.c.b16 %v637, %v636
        %v650 = vpack.c.b16 %v639, %v638
        %v651 = vpack.c.b16 %v641, %v640
        %v652 = vpack.c.b16 %v643, %v642
        %v653 = vpack.c.b16 %v645, %v644
        %v655 = vsel %vm488, %v646, 0
        %v658 = vsel %vm488, %v647, 0
        %v661 = vsel %vm488, %v648, 0
        %v664 = vsel %vm488, %v649, 0
        %v667 = vsel %vm488, %v650, 0
        %v670 = vsel %vm488, %v651, 0
        %v673 = vsel %vm488, %v652, 0
        %v676 = vsel %vm488, %v653, 0
        %v679 = vsel %vm513, %v267, 0
        %681 = vmatprep.subr.bf16.mxu0 0
        %682 = vmatpush1.bf16.msra.mxu0 %v679
        %683 = vmatprep.subr.bf16.mxu0 0
        %684 = vmatpush1.bf16.msra.mxu0 0
        %685 = vmatprep.subr.bf16.mxu0 0
        %686 = vmatpush1.bf16.msra.mxu0 0
        %687 = vmatprep.subr.bf16.mxu0 0
        %688 = vmatpush1.bf16.msra.mxu0 0
        %689 = vmatprep.subr.bf16.mxu0 0
        %690 = vmatpush1.bf16.msra.mxu0 0
        %691 = vmatprep.subr.bf16.mxu0 0
        %692 = vmatpush1.bf16.msra.mxu0 0
        %693 = vmatprep.subr.bf16.mxu0 0
        %694 = vmatpush1.bf16.msra.mxu0 0
        %695 = vmatprep.subr.bf16.mxu0 0
        %696 = vmatpush1.bf16.msra.mxu0 0
        %697 = vmatprep.subr.bf16.mxu0 0
        %698 = vmatpush1.bf16.msra.mxu0 0
        %699 = vmatprep.subr.bf16.mxu0 0
        %700 = vmatpush1.bf16.msra.mxu0 0
        %701 = vmatprep.subr.bf16.mxu0 0
        %702 = vmatpush1.bf16.msra.mxu0 0
        %703 = vmatprep.subr.bf16.mxu0 0
        %704 = vmatpush1.bf16.msra.mxu0 0
        %705 = vmatprep.subr.bf16.mxu0 0
        %706 = vmatpush1.bf16.msra.mxu0 0
        %707 = vmatprep.subr.bf16.mxu0 0
        %708 = vmatpush1.bf16.msra.mxu0 0
        %709 = vmatprep.subr.bf16.mxu0 0
        %710 = vmatpush1.bf16.msra.mxu0 0
        %711 = vmatprep.subr.bf16.mxu0 0
        %712 = vmatpush1.bf16.msra.mxu0 0
        %713 = vmatprep.mubr.bf16.mxu0 0
        %714 = vmatmul.mubr.bf16.gmra.mrb[0].mxu0 %v655
        %v715 = vpop.f32.mrb[0].mxu0
        %v716 = vadd.f32 %v552, %v715
        %v717 = vpop.f32.mrb[0].mxu0
        %v718 = vpop.f32.mrb[0].mxu0
        %v719 = vadd.f32 %v555, %v718
        %v720 = vpop.f32.mrb[0].mxu0
        %721 = vmatprep.mubr.bf16.mxu0 0
        %722 = vmatmul.mubr.bf16.gmra.mrb[0].mxu0 %v658
        %v723 = vpop.f32.mrb[0].mxu0
        %v724 = vadd.f32 %v560, %v723
        %v725 = vpop.f32.mrb[0].mxu0
        %v726 = vpop.f32.mrb[0].mxu0
        %v727 = vadd.f32 %v563, %v726
        %v728 = vpop.f32.mrb[0].mxu0
        %729 = vmatprep.mubr.bf16.mxu0 0
        %730 = vmatmul.mubr.bf16.gmra.mrb[0].mxu0 %v661
        %v731 = vpop.f32.mrb[0].mxu0
        %v732 = vadd.f32 %v568, %v731
        %v733 = vpop.f32.mrb[0].mxu0
        %v734 = vpop.f32.mrb[0].mxu0
        %v735 = vadd.f32 %v571, %v734
        %v736 = vpop.f32.mrb[0].mxu0
        %737 = vmatprep.mubr.bf16.mxu0 0
        %738 = vmatmul.mubr.bf16.gmra.mrb[0].mxu0 %v664
        %v739 = vpop.f32.mrb[0].mxu0
        %v740 = vadd.f32 %v576, %v739
        %v741 = vpop.f32.mrb[0].mxu0
        %v742 = vpop.f32.mrb[0].mxu0
        %v743 = vadd.f32 %v579, %v742
        %v744 = vpop.f32.mrb[0].mxu0
        %745 = vmatprep.mubr.bf16.mxu0 0
        %746 = vmatmul.mubr.bf16.gmra.mrb[0].mxu0 %v667
        %v747 = vpop.f32.mrb[0].mxu0
        %v748 = vadd.f32 %v584, %v747
        %v749 = vpop.f32.mrb[0].mxu0
        %v750 = vpop.f32.mrb[0].mxu0
        %v751 = vadd.f32 %v587, %v750
        %v752 = vpop.f32.mrb[0].mxu0
        %753 = vmatprep.mubr.bf16.mxu0 0
        %754 = vmatmul.mubr.bf16.gmra.mrb[0].mxu0 %v670
        %v755 = vpop.f32.mrb[0].mxu0
        %v756 = vadd.f32 %v592, %v755
        %v757 = vpop.f32.mrb[0].mxu0
        %v758 = vpop.f32.mrb[0].mxu0
        %v759 = vadd.f32 %v595, %v758
        %v760 = vpop.f32.mrb[0].mxu0
        %761 = vmatprep.mubr.bf16.mxu0 0
        %762 = vmatmul.mubr.bf16.gmra.mrb[0].mxu0 %v673
        %v763 = vpop.f32.mrb[0].mxu0
        %v764 = vadd.f32 %v600, %v763
        %v765 = vpop.f32.mrb[0].mxu0
        %v766 = vpop.f32.mrb[0].mxu0
        %v767 = vadd.f32 %v603, %v766
        %v768 = vpop.f32.mrb[0].mxu0
        %769 = vmatprep.mubr.bf16.mxu0 0
        %770 = vmatmul.mubr.bf16.gmra.mrb[0].mxu0 %v676
        %v771 = vpop.f32.mrb[0].mxu0
        %v772 = vadd.f32 %v608, %v771
        %v773 = vpop.f32.mrb[0].mxu0
        %v774 = vpop.f32.mrb[0].mxu0
        %v775 = vadd.f32 %v611, %v774
        %v776 = vpop.f32.mrb[0].mxu0
        %777 = vdwg.mxu0
        %v778 = vld [vmem:[#allocation5 + $0x8] sm:$0xf]
        %vm787 = vcmask 1042432
        %vm788 = vcmask 1046532
        %vm789 = vmor %vm787, %vm788
        %v790 = vrot.slane %v237, 5
        %v791 = vrot.slane %v790, 4
        %v792 = vrot.slane %v238, 5
        %v793 = vsel %vm789, %v791, %v792
        %v794 = vrot.slane %v792, 4
        %v795 = vrot.slane %v239, 5
        %v796 = vsel %vm789, %v794, %v795
        %v797 = vrot.slane %v240, 5
        %v798 = vrot.slane %v797, 4
        %v799 = vrot.slane %v241, 5
        %v800 = vsel %vm789, %v798, %v799
        %v801 = vrot.slane %v799, 4
        %v802 = vrot.slane %v242, 5
        %v803 = vsel %vm789, %v801, %v802
        %v804 = vrot.slane %v243, 5
        %v805 = vrot.slane %v804, 4
        %v806 = vrot.slane %v244, 5
        %v807 = vsel %vm789, %v805, %v806
        %v808 = vrot.slane %v806, 4
        %v809 = vrot.slane %v245, 5
        %v810 = vsel %vm789, %v808, %v809
        %v811 = vrot.slane %v246, 5
        %v812 = vrot.slane %v811, 4
        %v813 = vrot.slane %v247, 5
        %v814 = vsel %vm789, %v812, %v813
        %v815 = vrot.slane %v813, 4
        %v816 = vrot.slane %v248, 5
        %v817 = vsel %vm789, %v815, %v816
        %v818 = vrot.slane %v249, 5
        %v819 = vrot.slane %v818, 4
        %v820 = vrot.slane %v250, 5
        %v821 = vsel %vm789, %v819, %v820
        %v822 = vrot.slane %v820, 4
        %v823 = vrot.slane %v251, 5
        %v824 = vsel %vm789, %v822, %v823
        %v825 = vrot.slane %v252, 5
        %v826 = vrot.slane %v825, 4
        %v827 = vrot.slane %v253, 5
        %v828 = vsel %vm789, %v826, %v827
        %v829 = vrot.slane %v827, 4
        %v830 = vrot.slane %v254, 5
        %v831 = vsel %vm789, %v829, %v830
        %v832 = vrot.slane %v255, 5
        %v833 = vrot.slane %v832, 4
        %v834 = vrot.slane %v256, 5
        %v835 = vsel %vm789, %v833, %v834
        %v836 = vrot.slane %v834, 4
        %v837 = vrot.slane %v257, 5
        %v838 = vsel %vm789, %v836, %v837
        %v839 = vrot.slane %v258, 5
        %v840 = vrot.slane %v839, 4
        %v841 = vrot.slane %v259, 5
        %v842 = vsel %vm789, %v840, %v841
        %v843 = vrot.slane %v841, 4
        %v844 = vrot.slane %v260, 5
        %v845 = vsel %vm789, %v843, %v844
        %v846 = vunpack.c.l.b16 %v793
        %v847 = vunpack.c.l.b16 %v796
        %v848 = vunpack.c.l.b16 %v800
        %v849 = vunpack.c.l.b16 %v803
        %v850 = vunpack.c.l.b16 %v807
        %v851 = vunpack.c.l.b16 %v810
        %v852 = vunpack.c.l.b16 %v814
        %v853 = vunpack.c.l.b16 %v817
        %v854 = vunpack.c.l.b16 %v821
        %v855 = vunpack.c.l.b16 %v824
        %v856 = vunpack.c.l.b16 %v828
        %v857 = vunpack.c.l.b16 %v831
        %v858 = vunpack.c.l.b16 %v835
        %v859 = vunpack.c.l.b16 %v838
        %v860 = vunpack.c.l.b16 %v842
        %v861 = vunpack.c.l.b16 %v845
        %v862 = vpack.c.b16 %v847, %v846
        %v863 = vpack.c.b16 %v849, %v848
        %v864 = vpack.c.b16 %v851, %v850
        %v865 = vpack.c.b16 %v853, %v852
        %v866 = vpack.c.b16 %v855, %v854
        %v867 = vpack.c.b16 %v857, %v856
        %v868 = vpack.c.b16 %v859, %v858
        %v869 = vpack.c.b16 %v861, %v860
        %v871 = vsel %vm488, %v862, 0
        %v874 = vsel %vm488, %v863, 0
        %v877 = vsel %vm488, %v864, 0
        %v880 = vsel %vm488, %v865, 0
        %v883 = vsel %vm488, %v866, 0
        %v886 = vsel %vm488, %v867, 0
        %v889 = vsel %vm488, %v868, 0
        %v892 = vsel %vm488, %v869, 0
        %v895 = vsel %vm513, %v778, 0
        %897 = vmatprep.subr.bf16.mxu0 0
        %898 = vmatpush1.bf16.msra.mxu0 %v895
        %899 = vmatprep.subr.bf16.mxu0 0
        %900 = vmatpush1.bf16.msra.mxu0 0
        %901 = vmatprep.subr.bf16.mxu0 0
        %902 = vmatpush1.bf16.msra.mxu0 0
        %903 = vmatprep.subr.bf16.mxu0 0
        %904 = vmatpush1.bf16.msra.mxu0 0
        %905 = vmatprep.subr.bf16.mxu0 0
        %906 = vmatpush1.bf16.msra.mxu0 0
        %907 = vmatprep.subr.bf16.mxu0 0
        %908 = vmatpush1.bf16.msra.mxu0 0
        %909 = vmatprep.subr.bf16.mxu0 0
        %910 = vmatpush1.bf16.msra.mxu0 0
        %911 = vmatprep.subr.bf16.mxu0 0
        %912 = vmatpush1.bf16.msra.mxu0 0
        %913 = vmatprep.subr.bf16.mxu0 0
        %914 = vmatpush1.bf16.msra.mxu0 0
        %915 = vmatprep.subr.bf16.mxu0 0
        %916 = vmatpush1.bf16.msra.mxu0 0
        %917 = vmatprep.subr.bf16.mxu0 0
        %918 = vmatpush1.bf16.msra.mxu0 0
        %919 = vmatprep.subr.bf16.mxu0 0
        %920 = vmatpush1.bf16.msra.mxu0 0
        %921 = vmatprep.subr.bf16.mxu0 0
        %922 = vmatpush1.bf16.msra.mxu0 0
        %923 = vmatprep.subr.bf16.mxu0 0
        %924 = vmatpush1.bf16.msra.mxu0 0
        %925 = vmatprep.subr.bf16.mxu0 0
        %926 = vmatpush1.bf16.msra.mxu0 0
        %927 = vmatprep.subr.bf16.mxu0 0
        %928 = vmatpush1.bf16.msra.mxu0 0
        %929 = vmatprep.mubr.bf16.mxu0 0
        %930 = vmatmul.mubr.bf16.gmra.mrb[0].mxu0 %v871
        %v931 = vpop.f32.mrb[0].mxu0
        %v932 = vadd.f32 0.0, %v931
        %v933 = vpop.f32.mrb[0].mxu0
        %v934 = vpop.f32.mrb[0].mxu0
        %v935 = vadd.f32 0.0, %v934
        %v936 = vpop.f32.mrb[0].mxu0
        %937 = vmatprep.mubr.bf16.mxu0 0
        %938 = vmatmul.mubr.bf16.gmra.mrb[0].mxu0 %v874
        %v939 = vpop.f32.mrb[0].mxu0
        %v940 = vadd.f32 0.0, %v939
        %v941 = vpop.f32.mrb[0].mxu0
        %v942 = vpop.f32.mrb[0].mxu0
        %v943 = vadd.f32 0.0, %v942
        %v944 = vpop.f32.mrb[0].mxu0
        %945 = vmatprep.mubr.bf16.mxu0 0
        %946 = vmatmul.mubr.bf16.gmra.mrb[0].mxu0 %v877
        %v947 = vpop.f32.mrb[0].mxu0
        %v948 = vadd.f32 0.0, %v947
        %v949 = vpop.f32.mrb[0].mxu0
        %v950 = vpop.f32.mrb[0].mxu0
        %v951 = vadd.f32 0.0, %v950
        %v952 = vpop.f32.mrb[0].mxu0
        %953 = vmatprep.mubr.bf16.mxu0 0
        %954 = vmatmul.mubr.bf16.gmra.mrb[0].mxu0 %v880
        %v955 = vpop.f32.mrb[0].mxu0
        %v956 = vadd.f32 0.0, %v955
        %v957 = vpop.f32.mrb[0].mxu0
        %v958 = vpop.f32.mrb[0].mxu0
        %v959 = vadd.f32 0.0, %v958
        %v960 = vpop.f32.mrb[0].mxu0
        %961 = vmatprep.mubr.bf16.mxu0 0
        %962 = vmatmul.mubr.bf16.gmra.mrb[0].mxu0 %v883
        %v963 = vpop.f32.mrb[0].mxu0
        %v964 = vadd.f32 0.0, %v963
        %v965 = vpop.f32.mrb[0].mxu0
        %v966 = vpop.f32.mrb[0].mxu0
        %v967 = vadd.f32 0.0, %v966
        %v968 = vpop.f32.mrb[0].mxu0
        %969 = vmatprep.mubr.bf16.mxu0 0
        %970 = vmatmul.mubr.bf16.gmra.mrb[0].mxu0 %v886
        %v971 = vpop.f32.mrb[0].mxu0
        %v972 = vadd.f32 0.0, %v971
        %v973 = vpop.f32.mrb[0].mxu0
        %v974 = vpop.f32.mrb[0].mxu0
        %v975 = vadd.f32 0.0, %v974
        %v976 = vpop.f32.mrb[0].mxu0
        %977 = vmatprep.mubr.bf16.mxu0 0
        %978 = vmatmul.mubr.bf16.gmra.mrb[0].mxu0 %v889
        %v979 = vpop.f32.mrb[0].mxu0
        %v980 = vadd.f32 0.0, %v979
        %v981 = vpop.f32.mrb[0].mxu0
        %v982 = vpop.f32.mrb[0].mxu0
        %v983 = vadd.f32 0.0, %v982
        %v984 = vpop.f32.mrb[0].mxu0
        %985 = vmatprep.mubr.bf16.mxu0 0
        %986 = vmatmul.mubr.bf16.gmra.mrb[0].mxu0 %v892
        %v987 = vpop.f32.mrb[0].mxu0
        %v988 = vadd.f32 0.0, %v987
        %v989 = vpop.f32.mrb[0].mxu0
        %v990 = vpop.f32.mrb[0].mxu0
        %v991 = vadd.f32 0.0, %v990
        %v992 = vpop.f32.mrb[0].mxu0
        %993 = vdwg.mxu0
        %v994 = vadd.f32 %v716, %v932
        %v995 = vadd.f32 %v719, %v935
        %v996 = vadd.f32 %v724, %v940
        %v997 = vadd.f32 %v727, %v943
        %v998 = vadd.f32 %v732, %v948
        %v999 = vadd.f32 %v735, %v951
        %v1000 = vadd.f32 %v740, %v956
        %v1001 = vadd.f32 %v743, %v959
        %v1002 = vadd.f32 %v748, %v964
        %v1003 = vadd.f32 %v751, %v967
        %v1004 = vadd.f32 %v756, %v972
        %v1005 = vadd.f32 %v759, %v975
        %v1006 = vadd.f32 %v764, %v980
        %v1007 = vadd.f32 %v767, %v983
        %v1008 = vadd.f32 %v772, %v988
        %v1009 = vadd.f32 %v775, %v991
        %v1010 = vld [vmem:[#allocation5 + $0xc] sm:$0xf]
        %v1013 = vunpack.c.l.b16 %v261
        %v1014 = vunpack.c.l.b16 %v262
        %v1015 = vpack.c.b16 %v1014, %v1013
        %v1017 = vsel %vm488, %v1015, 0
        %v1020 = vsel %vm513, %v1010, 0
        %1022 = vmatprep.subr.bf16.mxu0 0
        %1023 = vmatpush1.bf16.msra.mxu0 %v1020
        %1024 = vmatprep.subr.bf16.mxu0 0
        %1025 = vmatpush1.bf16.msra.mxu0 0
        %1026 = vmatprep.subr.bf16.mxu0 0
        %1027 = vmatpush1.bf16.msra.mxu0 0
        %1028 = vmatprep.subr.bf16.mxu0 0
        %1029 = vmatpush1.bf16.msra.mxu0 0
        %1030 = vmatprep.subr.bf16.mxu0 0
        %1031 = vmatpush1.bf16.msra.mxu0 0
        %1032 = vmatprep.subr.bf16.mxu0 0
        %1033 = vmatpush1.bf16.msra.mxu0 0
        %1034 = vmatprep.subr.bf16.mxu0 0
        %1035 = vmatpush1.bf16.msra.mxu0 0
        %1036 = vmatprep.subr.bf16.mxu0 0
        %1037 = vmatpush1.bf16.msra.mxu0 0
        %1038 = vmatprep.subr.bf16.mxu0 0
        %1039 = vmatpush1.bf16.msra.mxu0 0
        %1040 = vmatprep.subr.bf16.mxu0 0
        %1041 = vmatpush1.bf16.msra.mxu0 0
        %1042 = vmatprep.subr.bf16.mxu0 0
        %1043 = vmatpush1.bf16.msra.mxu0 0
        %1044 = vmatprep.subr.bf16.mxu0 0
        %1045 = vmatpush1.bf16.msra.mxu0 0
        %1046 = vmatprep.subr.bf16.mxu0 0
        %1047 = vmatpush1.bf16.msra.mxu0 0
        %1048 = vmatprep.subr.bf16.mxu0 0
        %1049 = vmatpush1.bf16.msra.mxu0 0
        %1050 = vmatprep.subr.bf16.mxu0 0
        %1051 = vmatpush1.bf16.msra.mxu0 0
        %1052 = vmatprep.subr.bf16.mxu0 0
        %1053 = vmatpush1.bf16.msra.mxu0 0
        %1054 = vmatprep.mubr.bf16.mxu0 0
        %1055 = vmatmul.mubr.bf16.gmra.mrb[0].mxu0 %v658
        %v1056 = vpop.f32.mrb[0].mxu0
        %v1057 = vadd.f32 0.0, %v1056
        %v1058 = vpop.f32.mrb[0].mxu0
        %v1059 = vpop.f32.mrb[0].mxu0
        %v1060 = vadd.f32 0.0, %v1059
        %v1061 = vpop.f32.mrb[0].mxu0
        %1062 = vmatprep.mubr.bf16.mxu0 0
        %1063 = vmatmul.mubr.bf16.gmra.mrb[0].mxu0 %v661
        %v1064 = vpop.f32.mrb[0].mxu0
        %v1065 = vadd.f32 0.0, %v1064
        %v1066 = vpop.f32.mrb[0].mxu0
        %v1067 = vpop.f32.mrb[0].mxu0
        %v1068 = vadd.f32 0.0, %v1067
        %v1069 = vpop.f32.mrb[0].mxu0
        %1070 = vmatprep.mubr.bf16.mxu0 0
        %1071 = vmatmul.mubr.bf16.gmra.mrb[0].mxu0 %v664
        %v1072 = vpop.f32.mrb[0].mxu0
        %v1073 = vadd.f32 0.0, %v1072
        %v1074 = vpop.f32.mrb[0].mxu0
        %v1075 = vpop.f32.mrb[0].mxu0
        %v1076 = vadd.f32 0.0, %v1075
        %v1077 = vpop.f32.mrb[0].mxu0
        %1078 = vmatprep.mubr.bf16.mxu0 0
        %1079 = vmatmul.mubr.bf16.gmra.mrb[0].mxu0 %v667
        %v1080 = vpop.f32.mrb[0].mxu0
        %v1081 = vadd.f32 0.0, %v1080
        %v1082 = vpop.f32.mrb[0].mxu0
        %v1083 = vpop.f32.mrb[0].mxu0
        %v1084 = vadd.f32 0.0, %v1083
        %v1085 = vpop.f32.mrb[0].mxu0
        %1086 = vmatprep.mubr.bf16.mxu0 0
        %1087 = vmatmul.mubr.bf16.gmra.mrb[0].mxu0 %v670
        %v1088 = vpop.f32.mrb[0].mxu0
        %v1089 = vadd.f32 0.0, %v1088
        %v1090 = vpop.f32.mrb[0].mxu0
        %v1091 = vpop.f32.mrb[0].mxu0
        %v1092 = vadd.f32 0.0, %v1091
        %v1093 = vpop.f32.mrb[0].mxu0
        %1094 = vmatprep.mubr.bf16.mxu0 0
        %1095 = vmatmul.mubr.bf16.gmra.mrb[0].mxu0 %v673
        %v1096 = vpop.f32.mrb[0].mxu0
        %v1097 = vadd.f32 0.0, %v1096
        %v1098 = vpop.f32.mrb[0].mxu0
        %v1099 = vpop.f32.mrb[0].mxu0
        %v1100 = vadd.f32 0.0, %v1099
        %v1101 = vpop.f32.mrb[0].mxu0
        %1102 = vmatprep.mubr.bf16.mxu0 0
        %1103 = vmatmul.mubr.bf16.gmra.mrb[0].mxu0 %v676
        %v1104 = vpop.f32.mrb[0].mxu0
        %v1105 = vadd.f32 0.0, %v1104
        %v1106 = vpop.f32.mrb[0].mxu0
        %v1107 = vpop.f32.mrb[0].mxu0
        %v1108 = vadd.f32 0.0, %v1107
        %v1109 = vpop.f32.mrb[0].mxu0
        %1110 = vmatprep.mubr.bf16.mxu0 0
        %1111 = vmatmul.mubr.bf16.gmra.mrb[0].mxu0 %v1017
        %v1112 = vpop.f32.mrb[0].mxu0
        %v1113 = vadd.f32 0.0, %v1112
        %v1114 = vpop.f32.mrb[0].mxu0
        %v1115 = vpop.f32.mrb[0].mxu0
        %v1116 = vadd.f32 0.0, %v1115
        %v1117 = vpop.f32.mrb[0].mxu0
        %1118 = vdwg.mxu0
        %v1119 = vadd.f32 %v994, %v1057
        %v1120 = vadd.f32 %v995, %v1060
        %v1121 = vadd.f32 %v996, %v1065
        %v1122 = vadd.f32 %v997, %v1068
        %v1123 = vadd.f32 %v998, %v1073
        %v1124 = vadd.f32 %v999, %v1076
        %v1125 = vadd.f32 %v1000, %v1081
        %v1126 = vadd.f32 %v1001, %v1084
        %v1127 = vadd.f32 %v1002, %v1089
        %v1128 = vadd.f32 %v1003, %v1092
        %v1129 = vadd.f32 %v1004, %v1097
        %v1130 = vadd.f32 %v1005, %v1100
        %v1131 = vadd.f32 %v1006, %v1105
        %v1132 = vadd.f32 %v1007, %v1108
        %v1133 = vadd.f32 %v1008, %v1113
        %v1134 = vadd.f32 %v1009, %v1116
        %v1135 = vld [vmem:[#allocation5 + $0x10] sm:$0xf]
        %v1137 = vshrl.u32 %v261, 16
        %v1139 = vrot.slane %v1137, 4
        %v1140 = vshll.u32 %v261, 16
        %v1142 = vrot.slane %v1140, 5
        %v1143 = vor.u32 %v1139, %v1142
        %v1144 = vrot.slane %v1143, 4
        %v1146 = vshll.u32 %v262, 16
        %v1148 = vrot.slane %v1146, 5
        %v1149 = vsel %vm271, %v1144, %v1148
        %v1150 = vshrl.u32 %v262, 16
        %v1152 = vrot.slane %v1150, 4
        %v1153 = vor.u32 %v1152, %v1148
        %v1154 = vrot.slane %v1153, 4
        %v1156 = vshll.u32 %v263, 16
        %v1158 = vrot.slane %v1156, 5
        %v1159 = vsel %vm271, %v1154, %v1158
        %v1160 = vunpack.c.l.b16 %v1149
        %v1161 = vunpack.c.l.b16 %v1159
        %v1162 = vpack.c.b16 %v1161, %v1160
        %v1164 = vsel %vm488, %v1162, 0
        %v1167 = vsel %vm513, %v1135, 0
        %1169 = vmatprep.subr.bf16.mxu0 0
        %1170 = vmatpush1.bf16.msra.mxu0 %v1167
        %1171 = vmatprep.subr.bf16.mxu0 0
        %1172 = vmatpush1.bf16.msra.mxu0 0
        %1173 = vmatprep.subr.bf16.mxu0 0
        %1174 = vmatpush1.bf16.msra.mxu0 0
        %1175 = vmatprep.subr.bf16.mxu0 0
        %1176 = vmatpush1.bf16.msra.mxu0 0
        %1177 = vmatprep.subr.bf16.mxu0 0
        %1178 = vmatpush1.bf16.msra.mxu0 0
        %1179 = vmatprep.subr.bf16.mxu0 0
        %1180 = vmatpush1.bf16.msra.mxu0 0
        %1181 = vmatprep.subr.bf16.mxu0 0
        %1182 = vmatpush1.bf16.msra.mxu0 0
        %1183 = vmatprep.subr.bf16.mxu0 0
        %1184 = vmatpush1.bf16.msra.mxu0 0
        %1185 = vmatprep.subr.bf16.mxu0 0
        %1186 = vmatpush1.bf16.msra.mxu0 0
        %1187 = vmatprep.subr.bf16.mxu0 0
        %1188 = vmatpush1.bf16.msra.mxu0 0
        %1189 = vmatprep.subr.bf16.mxu0 0
        %1190 = vmatpush1.bf16.msra.mxu0 0
        %1191 = vmatprep.subr.bf16.mxu0 0
        %1192 = vmatpush1.bf16.msra.mxu0 0
        %1193 = vmatprep.subr.bf16.mxu0 0
        %1194 = vmatpush1.bf16.msra.mxu0 0
        %1195 = vmatprep.subr.bf16.mxu0 0
        %1196 = vmatpush1.bf16.msra.mxu0 0
        %1197 = vmatprep.subr.bf16.mxu0 0
        %1198 = vmatpush1.bf16.msra.mxu0 0
        %1199 = vmatprep.subr.bf16.mxu0 0
        %1200 = vmatpush1.bf16.msra.mxu0 0
        %1201 = vmatprep.mubr.bf16.mxu0 0
        %1202 = vmatmul.mubr.bf16.gmra.mrb[0].mxu0 %v493
        %v1203 = vpop.f32.mrb[0].mxu0
        %v1204 = vadd.f32 0.0, %v1203
        %v1205 = vpop.f32.mrb[0].mxu0
        %v1206 = vpop.f32.mrb[0].mxu0
        %v1207 = vadd.f32 0.0, %v1206
        %v1208 = vpop.f32.mrb[0].mxu0
        %1209 = vmatprep.mubr.bf16.mxu0 0
        %1210 = vmatmul.mubr.bf16.gmra.mrb[0].mxu0 %v496
        %v1211 = vpop.f32.mrb[0].mxu0
        %v1212 = vadd.f32 0.0, %v1211
        %v1213 = vpop.f32.mrb[0].mxu0
        %v1214 = vpop.f32.mrb[0].mxu0
        %v1215 = vadd.f32 0.0, %v1214
        %v1216 = vpop.f32.mrb[0].mxu0
        %1217 = vmatprep.mubr.bf16.mxu0 0
        %1218 = vmatmul.mubr.bf16.gmra.mrb[0].mxu0 %v499
        %v1219 = vpop.f32.mrb[0].mxu0
        %v1220 = vadd.f32 0.0, %v1219
        %v1221 = vpop.f32.mrb[0].mxu0
        %v1222 = vpop.f32.mrb[0].mxu0
        %v1223 = vadd.f32 0.0, %v1222
        %v1224 = vpop.f32.mrb[0].mxu0
        %1225 = vmatprep.mubr.bf16.mxu0 0
        %1226 = vmatmul.mubr.bf16.gmra.mrb[0].mxu0 %v502
        %v1227 = vpop.f32.mrb[0].mxu0
        %v1228 = vadd.f32 0.0, %v1227
        %v1229 = vpop.f32.mrb[0].mxu0
        %v1230 = vpop.f32.mrb[0].mxu0
        %v1231 = vadd.f32 0.0, %v1230
        %v1232 = vpop.f32.mrb[0].mxu0
        %1233 = vmatprep.mubr.bf16.mxu0 0
        %1234 = vmatmul.mubr.bf16.gmra.mrb[0].mxu0 %v505
        %v1235 = vpop.f32.mrb[0].mxu0
        %v1236 = vadd.f32 0.0, %v1235
        %v1237 = vpop.f32.mrb[0].mxu0
        %v1238 = vpop.f32.mrb[0].mxu0
        %v1239 = vadd.f32 0.0, %v1238
        %v1240 = vpop.f32.mrb[0].mxu0
        %1241 = vmatprep.mubr.bf16.mxu0 0
        %1242 = vmatmul.mubr.bf16.gmra.mrb[0].mxu0 %v508
        %v1243 = vpop.f32.mrb[0].mxu0
        %v1244 = vadd.f32 0.0, %v1243
        %v1245 = vpop.f32.mrb[0].mxu0
        %v1246 = vpop.f32.mrb[0].mxu0
        %v1247 = vadd.f32 0.0, %v1246
        %v1248 = vpop.f32.mrb[0].mxu0
        %1249 = vmatprep.mubr.bf16.mxu0 0
        %1250 = vmatmul.mubr.bf16.gmra.mrb[0].mxu0 %v511
        %v1251 = vpop.f32.mrb[0].mxu0
        %v1252 = vadd.f32 0.0, %v1251
        %v1253 = vpop.f32.mrb[0].mxu0
        %v1254 = vpop.f32.mrb[0].mxu0
        %v1255 = vadd.f32 0.0, %v1254
        %v1256 = vpop.f32.mrb[0].mxu0
        %1257 = vmatprep.mubr.bf16.mxu0 0
        %1258 = vmatmul.mubr.bf16.gmra.mrb[0].mxu0 %v1164
        %v1259 = vpop.f32.mrb[0].mxu0
        %v1260 = vadd.f32 0.0, %v1259
        %v1261 = vpop.f32.mrb[0].mxu0
        %v1262 = vpop.f32.mrb[0].mxu0
        %v1263 = vadd.f32 0.0, %v1262
        %v1264 = vpop.f32.mrb[0].mxu0
        %1265 = vdwg.mxu0
        %v1266 = vadd.f32 %v1119, %v1204
        %v1267 = vadd.f32 %v1120, %v1207
        %v1268 = vadd.f32 %v1121, %v1212
        %v1269 = vadd.f32 %v1122, %v1215
        %v1270 = vadd.f32 %v1123, %v1220
        %v1271 = vadd.f32 %v1124, %v1223
        %v1272 = vadd.f32 %v1125, %v1228
        %v1273 = vadd.f32 %v1126, %v1231
        %v1274 = vadd.f32 %v1127, %v1236
        %v1275 = vadd.f32 %v1128, %v1239
        %v1276 = vadd.f32 %v1129, %v1244
        %v1277 = vadd.f32 %v1130, %v1247
        %v1278 = vadd.f32 %v1131, %v1252
        %v1279 = vadd.f32 %v1132, %v1255
        %v1280 = vadd.f32 %v1133, %v1260
        %v1281 = vadd.f32 %v1134, %v1263
        %v1282 = vld [vmem:[#allocation5 + $0x14] sm:$0xf]
        %v1284 = vrot.slane %v261, 5
        %v1285 = vrot.slane %v1284, 4
        %v1286 = vrot.slane %v262, 5
        %v1287 = vsel %vm789, %v1285, %v1286
        %v1288 = vrot.slane %v1286, 4
        %v1289 = vrot.slane %v263, 5
        %v1290 = vsel %vm789, %v1288, %v1289
        %v1291 = vunpack.c.l.b16 %v1287
        %v1292 = vunpack.c.l.b16 %v1290
        %v1293 = vpack.c.b16 %v1292, %v1291
        %v1295 = vsel %vm488, %v1293, 0
        %v1298 = vsel %vm513, %v1282, 0
        %1300 = vmatprep.subr.bf16.mxu0 0
        %1301 = vmatpush1.bf16.msra.mxu0 %v1298
        %1302 = vmatprep.subr.bf16.mxu0 0
        %1303 = vmatpush1.bf16.msra.mxu0 0
        %1304 = vmatprep.subr.bf16.mxu0 0
        %1305 = vmatpush1.bf16.msra.mxu0 0
        %1306 = vmatprep.subr.bf16.mxu0 0
        %1307 = vmatpush1.bf16.msra.mxu0 0
        %1308 = vmatprep.subr.bf16.mxu0 0
        %1309 = vmatpush1.bf16.msra.mxu0 0
        %1310 = vmatprep.subr.bf16.mxu0 0
        %1311 = vmatpush1.bf16.msra.mxu0 0
        %1312 = vmatprep.subr.bf16.mxu0 0
        %1313 = vmatpush1.bf16.msra.mxu0 0
        %1314 = vmatprep.subr.bf16.mxu0 0
        %1315 = vmatpush1.bf16.msra.mxu0 0
        %1316 = vmatprep.subr.bf16.mxu0 0
        %1317 = vmatpush1.bf16.msra.mxu0 0
        %1318 = vmatprep.subr.bf16.mxu0 0
        %1319 = vmatpush1.bf16.msra.mxu0 0
        %1320 = vmatprep.subr.bf16.mxu0 0
        %1321 = vmatpush1.bf16.msra.mxu0 0
        %1322 = vmatprep.subr.bf16.mxu0 0
        %1323 = vmatpush1.bf16.msra.mxu0 0
        %1324 = vmatprep.subr.bf16.mxu0 0
        %1325 = vmatpush1.bf16.msra.mxu0 0
        %1326 = vmatprep.subr.bf16.mxu0 0
        %1327 = vmatpush1.bf16.msra.mxu0 0
        %1328 = vmatprep.subr.bf16.mxu0 0
        %1329 = vmatpush1.bf16.msra.mxu0 0
        %1330 = vmatprep.subr.bf16.mxu0 0
        %1331 = vmatpush1.bf16.msra.mxu0 0
        %1332 = vmatprep.mubr.bf16.mxu0 0
        %1333 = vmatmul.mubr.bf16.gmra.mrb[0].mxu0 %v874
        %v1334 = vpop.f32.mrb[0].mxu0
        %v1335 = vadd.f32 0.0, %v1334
        %v1336 = vpop.f32.mrb[0].mxu0
        %v1337 = vpop.f32.mrb[0].mxu0
        %v1338 = vadd.f32 0.0, %v1337
        %v1339 = vpop.f32.mrb[0].mxu0
        %1340 = vmatprep.mubr.bf16.mxu0 0
        %1341 = vmatmul.mubr.bf16.gmra.mrb[0].mxu0 %v877
        %v1342 = vpop.f32.mrb[0].mxu0
        %v1343 = vadd.f32 0.0, %v1342
        %v1344 = vpop.f32.mrb[0].mxu0
        %v1345 = vpop.f32.mrb[0].mxu0
        %v1346 = vadd.f32 0.0, %v1345
        %v1347 = vpop.f32.mrb[0].mxu0
        %1348 = vmatprep.mubr.bf16.mxu0 0
        %1349 = vmatmul.mubr.bf16.gmra.mrb[0].mxu0 %v880
        %v1350 = vpop.f32.mrb[0].mxu0
        %v1351 = vadd.f32 0.0, %v1350
        %v1352 = vpop.f32.mrb[0].mxu0
        %v1353 = vpop.f32.mrb[0].mxu0
        %v1354 = vadd.f32 0.0, %v1353
        %v1355 = vpop.f32.mrb[0].mxu0
        %1356 = vmatprep.mubr.bf16.mxu0 0
        %1357 = vmatmul.mubr.bf16.gmra.mrb[0].mxu0 %v883
        %v1358 = vpop.f32.mrb[0].mxu0
        %v1359 = vadd.f32 0.0, %v1358
        %v1360 = vpop.f32.mrb[0].mxu0
        %v1361 = vpop.f32.mrb[0].mxu0
        %v1362 = vadd.f32 0.0, %v1361
        %v1363 = vpop.f32.mrb[0].mxu0
        %1364 = vmatprep.mubr.bf16.mxu0 0
        %1365 = vmatmul.mubr.bf16.gmra.mrb[0].mxu0 %v886
        %v1366 = vpop.f32.mrb[0].mxu0
        %v1367 = vadd.f32 0.0, %v1366
        %v1368 = vpop.f32.mrb[0].mxu0
        %v1369 = vpop.f32.mrb[0].mxu0
        %v1370 = vadd.f32 0.0, %v1369
        %v1371 = vpop.f32.mrb[0].mxu0
        %1372 = vmatprep.mubr.bf16.mxu0 0
        %1373 = vmatmul.mubr.bf16.gmra.mrb[0].mxu0 %v889
        %v1374 = vpop.f32.mrb[0].mxu0
        %v1375 = vadd.f32 0.0, %v1374
        %v1376 = vpop.f32.mrb[0].mxu0
        %v1377 = vpop.f32.mrb[0].mxu0
        %v1378 = vadd.f32 0.0, %v1377
        %v1379 = vpop.f32.mrb[0].mxu0
        %1380 = vmatprep.mubr.bf16.mxu0 0
        %1381 = vmatmul.mubr.bf16.gmra.mrb[0].mxu0 %v892
        %v1382 = vpop.f32.mrb[0].mxu0
        %v1383 = vadd.f32 0.0, %v1382
        %v1384 = vpop.f32.mrb[0].mxu0
        %v1385 = vpop.f32.mrb[0].mxu0
        %v1386 = vadd.f32 0.0, %v1385
        %v1387 = vpop.f32.mrb[0].mxu0
        %1388 = vmatprep.mubr.bf16.mxu0 0
        %1389 = vmatmul.mubr.bf16.gmra.mrb[0].mxu0 %v1295
        %v1390 = vpop.f32.mrb[0].mxu0
        %v1391 = vadd.f32 0.0, %v1390
        %v1392 = vpop.f32.mrb[0].mxu0
        %v1393 = vpop.f32.mrb[0].mxu0
        %v1394 = vadd.f32 0.0, %v1393
        %v1395 = vpop.f32.mrb[0].mxu0
        %1396 = vdwg.mxu0
        %v1397 = vadd.f32 %v1266, %v1335
        %v1398 = vadd.f32 %v1267, %v1338
        %v1399 = vadd.f32 %v1268, %v1343
        %v1400 = vadd.f32 %v1269, %v1346
        %v1401 = vadd.f32 %v1270, %v1351
        %v1402 = vadd.f32 %v1271, %v1354
        %v1403 = vadd.f32 %v1272, %v1359
        %v1404 = vadd.f32 %v1273, %v1362
        %v1405 = vadd.f32 %v1274, %v1367
        %v1406 = vadd.f32 %v1275, %v1370
        %v1407 = vadd.f32 %v1276, %v1375
        %v1408 = vadd.f32 %v1277, %v1378
        %v1409 = vadd.f32 %v1278, %v1383
        %v1410 = vadd.f32 %v1279, %v1386
        %v1411 = vadd.f32 %v1280, %v1391
        %v1412 = vadd.f32 %v1281, %v1394
        %v1413 = vld [vmem:[#allocation5 + $0x18] sm:$0xf]
        %v1416 = vunpack.c.l.b16 %v264
        %v1417 = vunpack.c.l.b16 %v265
        %v1418 = vpack.c.b16 %v1417, %v1416
        %v1420 = vsel %vm488, %v1418, 0
        %v1423 = vsel %vm513, %v1413, 0
        %1425 = vmatprep.subr.bf16.mxu0 0
        %1426 = vmatpush1.bf16.msra.mxu0 %v1423
        %1427 = vmatprep.subr.bf16.mxu0 0
        %1428 = vmatpush1.bf16.msra.mxu0 0
        %1429 = vmatprep.subr.bf16.mxu0 0
        %1430 = vmatpush1.bf16.msra.mxu0 0
        %1431 = vmatprep.subr.bf16.mxu0 0
        %1432 = vmatpush1.bf16.msra.mxu0 0
        %1433 = vmatprep.subr.bf16.mxu0 0
        %1434 = vmatpush1.bf16.msra.mxu0 0
        %1435 = vmatprep.subr.bf16.mxu0 0
        %1436 = vmatpush1.bf16.msra.mxu0 0
        %1437 = vmatprep.subr.bf16.mxu0 0
        %1438 = vmatpush1.bf16.msra.mxu0 0
        %1439 = vmatprep.subr.bf16.mxu0 0
        %1440 = vmatpush1.bf16.msra.mxu0 0
        %1441 = vmatprep.subr.bf16.mxu0 0
        %1442 = vmatpush1.bf16.msra.mxu0 0
        %1443 = vmatprep.subr.bf16.mxu0 0
        %1444 = vmatpush1.bf16.msra.mxu0 0
        %1445 = vmatprep.subr.bf16.mxu0 0
        %1446 = vmatpush1.bf16.msra.mxu0 0
        %1447 = vmatprep.subr.bf16.mxu0 0
        %1448 = vmatpush1.bf16.msra.mxu0 0
        %1449 = vmatprep.subr.bf16.mxu0 0
        %1450 = vmatpush1.bf16.msra.mxu0 0
        %1451 = vmatprep.subr.bf16.mxu0 0
        %1452 = vmatpush1.bf16.msra.mxu0 0
        %1453 = vmatprep.subr.bf16.mxu0 0
        %1454 = vmatpush1.bf16.msra.mxu0 0
        %1455 = vmatprep.subr.bf16.mxu0 0
        %1456 = vmatpush1.bf16.msra.mxu0 0
        %1457 = vmatprep.mubr.bf16.mxu0 0
        %1458 = vmatmul.mubr.bf16.gmra.mrb[0].mxu0 %v661
        %v1459 = vpop.f32.mrb[0].mxu0
        %v1460 = vadd.f32 0.0, %v1459
        %v1461 = vpop.f32.mrb[0].mxu0
        %v1462 = vpop.f32.mrb[0].mxu0
        %v1463 = vadd.f32 0.0, %v1462
        %v1464 = vpop.f32.mrb[0].mxu0
        %1465 = vmatprep.mubr.bf16.mxu0 0
        %1466 = vmatmul.mubr.bf16.gmra.mrb[0].mxu0 %v664
        %v1467 = vpop.f32.mrb[0].mxu0
        %v1468 = vadd.f32 0.0, %v1467
        %v1469 = vpop.f32.mrb[0].mxu0
        %v1470 = vpop.f32.mrb[0].mxu0
        %v1471 = vadd.f32 0.0, %v1470
        %v1472 = vpop.f32.mrb[0].mxu0
        %1473 = vmatprep.mubr.bf16.mxu0 0
        %1474 = vmatmul.mubr.bf16.gmra.mrb[0].mxu0 %v667
        %v1475 = vpop.f32.mrb[0].mxu0
        %v1476 = vadd.f32 0.0, %v1475
        %v1477 = vpop.f32.mrb[0].mxu0
        %v1478 = vpop.f32.mrb[0].mxu0
        %v1479 = vadd.f32 0.0, %v1478
        %v1480 = vpop.f32.mrb[0].mxu0
        %1481 = vmatprep.mubr.bf16.mxu0 0
        %1482 = vmatmul.mubr.bf16.gmra.mrb[0].mxu0 %v670
        %v1483 = vpop.f32.mrb[0].mxu0
        %v1484 = vadd.f32 0.0, %v1483
        %v1485 = vpop.f32.mrb[0].mxu0
        %v1486 = vpop.f32.mrb[0].mxu0
        %v1487 = vadd.f32 0.0, %v1486
        %v1488 = vpop.f32.mrb[0].mxu0
        %1489 = vmatprep.mubr.bf16.mxu0 0
        %1490 = vmatmul.mubr.bf16.gmra.mrb[0].mxu0 %v673
        %v1491 = vpop.f32.mrb[0].mxu0
        %v1492 = vadd.f32 0.0, %v1491
        %v1493 = vpop.f32.mrb[0].mxu0
        %v1494 = vpop.f32.mrb[0].mxu0
        %v1495 = vadd.f32 0.0, %v1494
        %v1496 = vpop.f32.mrb[0].mxu0
        %1497 = vmatprep.mubr.bf16.mxu0 0
        %1498 = vmatmul.mubr.bf16.gmra.mrb[0].mxu0 %v676
        %v1499 = vpop.f32.mrb[0].mxu0
        %v1500 = vadd.f32 0.0, %v1499
        %v1501 = vpop.f32.mrb[0].mxu0
        %v1502 = vpop.f32.mrb[0].mxu0
        %v1503 = vadd.f32 0.0, %v1502
        %v1504 = vpop.f32.mrb[0].mxu0
        %1505 = vmatprep.mubr.bf16.mxu0 0
        %1506 = vmatmul.mubr.bf16.gmra.mrb[0].mxu0 %v1017
        %v1507 = vpop.f32.mrb[0].mxu0
        %v1508 = vadd.f32 0.0, %v1507
        %v1509 = vpop.f32.mrb[0].mxu0
        %v1510 = vpop.f32.mrb[0].mxu0
        %v1511 = vadd.f32 0.0, %v1510
        %v1512 = vpop.f32.mrb[0].mxu0
        %1513 = vmatprep.mubr.bf16.mxu0 0
        %1514 = vmatmul.mubr.bf16.gmra.mrb[0].mxu0 %v1420
        %v1515 = vpop.f32.mrb[0].mxu0
        %v1516 = vadd.f32 0.0, %v1515
        %v1517 = vpop.f32.mrb[0].mxu0
        %v1518 = vpop.f32.mrb[0].mxu0
        %v1519 = vadd.f32 0.0, %v1518
        %v1520 = vpop.f32.mrb[0].mxu0
        %1521 = vdwg.mxu0
        %v1522 = vadd.f32 %v1397, %v1460
        %v1523 = vadd.f32 %v1398, %v1463
        %v1524 = vadd.f32 %v1399, %v1468
        %v1525 = vadd.f32 %v1400, %v1471
        %v1526 = vadd.f32 %v1401, %v1476
        %v1527 = vadd.f32 %v1402, %v1479
        %v1528 = vadd.f32 %v1403, %v1484
        %v1529 = vadd.f32 %v1404, %v1487
        %v1530 = vadd.f32 %v1405, %v1492
        %v1531 = vadd.f32 %v1406, %v1495
        %v1532 = vadd.f32 %v1407, %v1500
        %v1533 = vadd.f32 %v1408, %v1503
        %v1534 = vadd.f32 %v1409, %v1508
        %v1535 = vadd.f32 %v1410, %v1511
        %v1536 = vadd.f32 %v1411, %v1516
        %v1537 = vadd.f32 %v1412, %v1519
        %v1538 = vld [vmem:[#allocation5 + $0x1c] sm:$0xf]
        %v1540 = vshrl.u32 %v264, 16
        %v1542 = vrot.slane %v1540, 4
        %v1543 = vshll.u32 %v264, 16
        %v1545 = vrot.slane %v1543, 5
        %v1546 = vor.u32 %v1542, %v1545
        %v1547 = vrot.slane %v1546, 4
        %v1549 = vshll.u32 %v265, 16
        %v1551 = vrot.slane %v1549, 5
        %v1552 = vsel %vm271, %v1547, %v1551
        %v1553 = vshrl.u32 %v265, 16
        %v1555 = vrot.slane %v1553, 4
        %v1556 = vor.u32 %v1555, %v1551
        %v1557 = vrot.slane %v1556, 4
        %v1559 = vshll.u32 %v266, 16
        %v1561 = vrot.slane %v1559, 5
        %v1562 = vsel %vm271, %v1557, %v1561
        %v1563 = vunpack.c.l.b16 %v1552
        %v1564 = vunpack.c.l.b16 %v1562
        %v1565 = vpack.c.b16 %v1564, %v1563
        %v1567 = vsel %vm488, %v1565, 0
        %v1570 = vsel %vm513, %v1538, 0
        %1572 = vmatprep.subr.bf16.mxu0 0
        %1573 = vmatpush1.bf16.msra.mxu0 %v1570
        %1574 = vmatprep.subr.bf16.mxu0 0
        %1575 = vmatpush1.bf16.msra.mxu0 0
        %1576 = vmatprep.subr.bf16.mxu0 0
        %1577 = vmatpush1.bf16.msra.mxu0 0
        %1578 = vmatprep.subr.bf16.mxu0 0
        %1579 = vmatpush1.bf16.msra.mxu0 0
        %1580 = vmatprep.subr.bf16.mxu0 0
        %1581 = vmatpush1.bf16.msra.mxu0 0
        %1582 = vmatprep.subr.bf16.mxu0 0
        %1583 = vmatpush1.bf16.msra.mxu0 0
        %1584 = vmatprep.subr.bf16.mxu0 0
        %1585 = vmatpush1.bf16.msra.mxu0 0
        %1586 = vmatprep.subr.bf16.mxu0 0
        %1587 = vmatpush1.bf16.msra.mxu0 0
        %1588 = vmatprep.subr.bf16.mxu0 0
        %1589 = vmatpush1.bf16.msra.mxu0 0
        %1590 = vmatprep.subr.bf16.mxu0 0
        %1591 = vmatpush1.bf16.msra.mxu0 0
        %1592 = vmatprep.subr.bf16.mxu0 0
        %1593 = vmatpush1.bf16.msra.mxu0 0
        %1594 = vmatprep.subr.bf16.mxu0 0
        %1595 = vmatpush1.bf16.msra.mxu0 0
        %1596 = vmatprep.subr.bf16.mxu0 0
        %1597 = vmatpush1.bf16.msra.mxu0 0
        %1598 = vmatprep.subr.bf16.mxu0 0
        %1599 = vmatpush1.bf16.msra.mxu0 0
        %1600 = vmatprep.subr.bf16.mxu0 0
        %1601 = vmatpush1.bf16.msra.mxu0 0
        %1602 = vmatprep.subr.bf16.mxu0 0
        %1603 = vmatpush1.bf16.msra.mxu0 0
        %1604 = vmatprep.mubr.bf16.mxu0 0
        %1605 = vmatmul.mubr.bf16.gmra.mrb[0].mxu0 %v496
        %v1606 = vpop.f32.mrb[0].mxu0
        %v1607 = vadd.f32 0.0, %v1606
        %v1608 = vpop.f32.mrb[0].mxu0
        %v1609 = vpop.f32.mrb[0].mxu0
        %v1610 = vadd.f32 0.0, %v1609
        %v1611 = vpop.f32.mrb[0].mxu0
        %1612 = vmatprep.mubr.bf16.mxu0 0
        %1613 = vmatmul.mubr.bf16.gmra.mrb[0].mxu0 %v499
        %v1614 = vpop.f32.mrb[0].mxu0
        %v1615 = vadd.f32 0.0, %v1614
        %v1616 = vpop.f32.mrb[0].mxu0
        %v1617 = vpop.f32.mrb[0].mxu0
        %v1618 = vadd.f32 0.0, %v1617
        %v1619 = vpop.f32.mrb[0].mxu0
        %1620 = vmatprep.mubr.bf16.mxu0 0
        %1621 = vmatmul.mubr.bf16.gmra.mrb[0].mxu0 %v502
        %v1622 = vpop.f32.mrb[0].mxu0
        %v1623 = vadd.f32 0.0, %v1622
        %v1624 = vpop.f32.mrb[0].mxu0
        %v1625 = vpop.f32.mrb[0].mxu0
        %v1626 = vadd.f32 0.0, %v1625
        %v1627 = vpop.f32.mrb[0].mxu0
        %1628 = vmatprep.mubr.bf16.mxu0 0
        %1629 = vmatmul.mubr.bf16.gmra.mrb[0].mxu0 %v505
        %v1630 = vpop.f32.mrb[0].mxu0
        %v1631 = vadd.f32 0.0, %v1630
        %v1632 = vpop.f32.mrb[0].mxu0
        %v1633 = vpop.f32.mrb[0].mxu0
        %v1634 = vadd.f32 0.0, %v1633
        %v1635 = vpop.f32.mrb[0].mxu0
        %1636 = vmatprep.mubr.bf16.mxu0 0
        %1637 = vmatmul.mubr.bf16.gmra.mrb[0].mxu0 %v508
        %v1638 = vpop.f32.mrb[0].mxu0
        %v1639 = vadd.f32 0.0, %v1638
        %v1640 = vpop.f32.mrb[0].mxu0
        %v1641 = vpop.f32.mrb[0].mxu0
        %v1642 = vadd.f32 0.0, %v1641
        %v1643 = vpop.f32.mrb[0].mxu0
        %1644 = vmatprep.mubr.bf16.mxu0 0
        %1645 = vmatmul.mubr.bf16.gmra.mrb[0].mxu0 %v511
        %v1646 = vpop.f32.mrb[0].mxu0
        %v1647 = vadd.f32 0.0, %v1646
        %v1648 = vpop.f32.mrb[0].mxu0
        %v1649 = vpop.f32.mrb[0].mxu0
        %v1650 = vadd.f32 0.0, %v1649
        %v1651 = vpop.f32.mrb[0].mxu0
        %1652 = vmatprep.mubr.bf16.mxu0 0
        %1653 = vmatmul.mubr.bf16.gmra.mrb[0].mxu0 %v1164
        %v1654 = vpop.f32.mrb[0].mxu0
        %v1655 = vadd.f32 0.0, %v1654
        %v1656 = vpop.f32.mrb[0].mxu0
        %v1657 = vpop.f32.mrb[0].mxu0
        %v1658 = vadd.f32 0.0, %v1657
        %v1659 = vpop.f32.mrb[0].mxu0
        %1660 = vmatprep.mubr.bf16.mxu0 0
        %1661 = vmatmul.mubr.bf16.gmra.mrb[0].mxu0 %v1567
        %v1662 = vpop.f32.mrb[0].mxu0
        %v1663 = vadd.f32 0.0, %v1662
        %v1664 = vpop.f32.mrb[0].mxu0
        %v1665 = vpop.f32.mrb[0].mxu0
        %v1666 = vadd.f32 0.0, %v1665
        %v1667 = vpop.f32.mrb[0].mxu0
        %1668 = vdwg.mxu0
        %v1669 = vadd.f32 %v1522, %v1607
        %v1670 = vadd.f32 %v1523, %v1610
        %v1671 = vadd.f32 %v1524, %v1615
        %v1672 = vadd.f32 %v1525, %v1618
        %v1673 = vadd.f32 %v1526, %v1623
        %v1674 = vadd.f32 %v1527, %v1626
        %v1675 = vadd.f32 %v1528, %v1631
        %v1676 = vadd.f32 %v1529, %v1634
        %v1677 = vadd.f32 %v1530, %v1639
        %v1678 = vadd.f32 %v1531, %v1642
        %v1679 = vadd.f32 %v1532, %v1647
        %v1680 = vadd.f32 %v1533, %v1650
        %v1681 = vadd.f32 %v1534, %v1655
        %v1682 = vadd.f32 %v1535, %v1658
        %v1683 = vadd.f32 %v1536, %v1663
        %v1684 = vadd.f32 %v1537, %v1666
        %v1685 = vld [vmem:[#allocation5 + $0x20] sm:$0xf]
        %v1687 = vrot.slane %v264, 5
        %v1688 = vrot.slane %v1687, 4
        %v1689 = vrot.slane %v265, 5
        %v1690 = vsel %vm789, %v1688, %v1689
        %v1691 = vrot.slane %v1689, 4
        %v1692 = vrot.slane %v266, 5
        %v1693 = vsel %vm789, %v1691, %v1692
        %v1694 = vunpack.c.l.b16 %v1690
        %v1695 = vunpack.c.l.b16 %v1693
        %v1696 = vpack.c.b16 %v1695, %v1694
        %v1698 = vsel %vm488, %v1696, 0
        %v1701 = vsel %vm513, %v1685, 0
        %1703 = vmatprep.subr.bf16.mxu0 0
        %1704 = vmatpush1.bf16.msra.mxu0 %v1701
        %1705 = vmatprep.subr.bf16.mxu0 0
        %1706 = vmatpush1.bf16.msra.mxu0 0
        %1707 = vmatprep.subr.bf16.mxu0 0
        %1708 = vmatpush1.bf16.msra.mxu0 0
        %1709 = vmatprep.subr.bf16.mxu0 0
        %1710 = vmatpush1.bf16.msra.mxu0 0
        %1711 = vmatprep.subr.bf16.mxu0 0
        %1712 = vmatpush1.bf16.msra.mxu0 0
        %1713 = vmatprep.subr.bf16.mxu0 0
        %1714 = vmatpush1.bf16.msra.mxu0 0
        %1715 = vmatprep.subr.bf16.mxu0 0
        %1716 = vmatpush1.bf16.msra.mxu0 0
        %1717 = vmatprep.subr.bf16.mxu0 0
        %1718 = vmatpush1.bf16.msra.mxu0 0
        %1719 = vmatprep.subr.bf16.mxu0 0
        %1720 = vmatpush1.bf16.msra.mxu0 0
        %1721 = vmatprep.subr.bf16.mxu0 0
        %1722 = vmatpush1.bf16.msra.mxu0 0
        %1723 = vmatprep.subr.bf16.mxu0 0
        %1724 = vmatpush1.bf16.msra.mxu0 0
        %1725 = vmatprep.subr.bf16.mxu0 0
        %1726 = vmatpush1.bf16.msra.mxu0 0
        %1727 = vmatprep.subr.bf16.mxu0 0
        %1728 = vmatpush1.bf16.msra.mxu0 0
        %1729 = vmatprep.subr.bf16.mxu0 0
        %1730 = vmatpush1.bf16.msra.mxu0 0
        %1731 = vmatprep.subr.bf16.mxu0 0
        %1732 = vmatpush1.bf16.msra.mxu0 0
        %1733 = vmatprep.subr.bf16.mxu0 0
        %1734 = vmatpush1.bf16.msra.mxu0 0
        %1735 = vmatprep.mubr.bf16.mxu0 0
        %1736 = vmatmul.mubr.bf16.gmra.mrb[0].mxu0 %v877
        %v1737 = vpop.f32.mrb[0].mxu0
        %v1738 = vadd.f32 0.0, %v1737
        %v1739 = vpop.f32.mrb[0].mxu0
        %v1740 = vpop.f32.mrb[0].mxu0
        %v1741 = vadd.f32 0.0, %v1740
        %v1742 = vpop.f32.mrb[0].mxu0
        %1743 = vmatprep.mubr.bf16.mxu0 0
        %1744 = vmatmul.mubr.bf16.gmra.mrb[0].mxu0 %v880
        %v1745 = vpop.f32.mrb[0].mxu0
        %v1746 = vadd.f32 0.0, %v1745
        %v1747 = vpop.f32.mrb[0].mxu0
        %v1748 = vpop.f32.mrb[0].mxu0
        %v1749 = vadd.f32 0.0, %v1748
        %v1750 = vpop.f32.mrb[0].mxu0
        %1751 = vmatprep.mubr.bf16.mxu0 0
        %1752 = vmatmul.mubr.bf16.gmra.mrb[0].mxu0 %v883
        %v1753 = vpop.f32.mrb[0].mxu0
        %v1754 = vadd.f32 0.0, %v1753
        %v1755 = vpop.f32.mrb[0].mxu0
        %v1756 = vpop.f32.mrb[0].mxu0
        %v1757 = vadd.f32 0.0, %v1756
        %v1758 = vpop.f32.mrb[0].mxu0
        %1759 = vmatprep.mubr.bf16.mxu0 0
        %1760 = vmatmul.mubr.bf16.gmra.mrb[0].mxu0 %v886
        %v1761 = vpop.f32.mrb[0].mxu0
        %v1762 = vadd.f32 0.0, %v1761
        %v1763 = vpop.f32.mrb[0].mxu0
        %v1764 = vpop.f32.mrb[0].mxu0
        %v1765 = vadd.f32 0.0, %v1764
        %v1766 = vpop.f32.mrb[0].mxu0
        %1767 = vmatprep.mubr.bf16.mxu0 0
        %1768 = vmatmul.mubr.bf16.gmra.mrb[0].mxu0 %v889
        %v1769 = vpop.f32.mrb[0].mxu0
        %v1770 = vadd.f32 0.0, %v1769
        %v1771 = vpop.f32.mrb[0].mxu0
        %v1772 = vpop.f32.mrb[0].mxu0
        %v1773 = vadd.f32 0.0, %v1772
        %v1774 = vpop.f32.mrb[0].mxu0
        %1775 = vmatprep.mubr.bf16.mxu0 0
        %1776 = vmatmul.mubr.bf16.gmra.mrb[0].mxu0 %v892
        %v1777 = vpop.f32.mrb[0].mxu0
        %v1778 = vadd.f32 0.0, %v1777
        %v1779 = vpop.f32.mrb[0].mxu0
        %v1780 = vpop.f32.mrb[0].mxu0
        %v1781 = vadd.f32 0.0, %v1780
        %v1782 = vpop.f32.mrb[0].mxu0
        %1783 = vmatprep.mubr.bf16.mxu0 0
        %1784 = vmatmul.mubr.bf16.gmra.mrb[0].mxu0 %v1295
        %v1785 = vpop.f32.mrb[0].mxu0
        %v1786 = vadd.f32 0.0, %v1785
        %v1787 = vpop.f32.mrb[0].mxu0
        %v1788 = vpop.f32.mrb[0].mxu0
        %v1789 = vadd.f32 0.0, %v1788
        %v1790 = vpop.f32.mrb[0].mxu0
        %1791 = vmatprep.mubr.bf16.mxu0 0
        %1792 = vmatmul.mubr.bf16.gmra.mrb[0].mxu0 %v1698
        %v1793 = vpop.f32.mrb[0].mxu0
        %v1794 = vadd.f32 0.0, %v1793
        %v1795 = vpop.f32.mrb[0].mxu0
        %v1796 = vpop.f32.mrb[0].mxu0
        %v1797 = vadd.f32 0.0, %v1796
        %v1798 = vpop.f32.mrb[0].mxu0
        %1799 = vdwg.mxu0
        %v1800 = vadd.f32 %v1669, %v1738
        %v1801 = vadd.f32 %v1670, %v1741
        %v1802 = vadd.f32 %v1671, %v1746
        %v1803 = vadd.f32 %v1672, %v1749
        %v1804 = vadd.f32 %v1673, %v1754
        %v1805 = vadd.f32 %v1674, %v1757
        %v1806 = vadd.f32 %v1675, %v1762
        %v1807 = vadd.f32 %v1676, %v1765
        %v1808 = vadd.f32 %v1677, %v1770
        %v1809 = vadd.f32 %v1678, %v1773
        %v1810 = vadd.f32 %v1679, %v1778
        %v1811 = vadd.f32 %v1680, %v1781
        %v1812 = vadd.f32 %v1681, %v1786
        %v1813 = vadd.f32 %v1682, %v1789
        %v1814 = vadd.f32 %v1683, %v1794
        %v1815 = vadd.f32 %v1684, %v1797
        %v1816 = vadd.f32 %v1800, %v1801
        %v1817 = vadd.f32 %v1816, %v1802
        %v1818 = vadd.f32 %v1817, %v1803
        %v1819 = vadd.f32 %v1818, %v1804
        %v1820 = vadd.f32 %v1819, %v1805
        %v1821 = vadd.f32 %v1820, %v1806
        %v1822 = vadd.f32 %v1821, %v1807
        %v1823 = vadd.f32 %v1822, %v1808
        %v1824 = vadd.f32 %v1823, %v1809
        %v1825 = vadd.f32 %v1824, %v1810
        %v1826 = vadd.f32 %v1825, %v1811
        %v1827 = vadd.f32 %v1826, %v1812
        %v1828 = vadd.f32 %v1827, %v1813
        %v1829 = vadd.f32 %v1828, %v1814
        %v1830 = vadd.f32 %v1829, %v1815
        %v1831 = vrot.slane %v1830, 4
        %v1832 = vadd.f32 %v1830, %v1831
        %v1833 = vrot.slane %v1832, 2
        %v1834 = vadd.f32 %v1832, %v1833
        %v1835 = vrot.slane %v1834, 1
        %v1836 = vadd.f32 %v1834, %v1835
        %1837 = vst [vmem:[%s230] sm:$0x1] %v1836
        %v1838 = vmul.f32 %v1800, %v1800
        %v1839 = vmul.f32 %v1801, %v1801
        %v1840 = vmul.f32 %v1802, %v1802
        %v1841 = vmul.f32 %v1803, %v1803
        %v1842 = vmul.f32 %v1804, %v1804
        %v1843 = vmul.f32 %v1805, %v1805
        %v1844 = vmul.f32 %v1806, %v1806
        %v1845 = vmul.f32 %v1807, %v1807
        %v1846 = vmul.f32 %v1808, %v1808
        %v1847 = vmul.f32 %v1809, %v1809
        %v1848 = vmul.f32 %v1810, %v1810
        %v1849 = vmul.f32 %v1811, %v1811
        %v1850 = vmul.f32 %v1812, %v1812
        %v1851 = vmul.f32 %v1813, %v1813
        %v1852 = vmul.f32 %v1814, %v1814
        %v1853 = vmul.f32 %v1815, %v1815
        %v1854 = vadd.f32 %v1838, %v1839
        %v1855 = vadd.f32 %v1854, %v1840
        %v1856 = vadd.f32 %v1855, %v1841
        %v1857 = vadd.f32 %v1856, %v1842
        %v1858 = vadd.f32 %v1857, %v1843
        %v1859 = vadd.f32 %v1858, %v1844
        %v1860 = vadd.f32 %v1859, %v1845
        %v1861 = vadd.f32 %v1860, %v1846
        %v1862 = vadd.f32 %v1861, %v1847
        %v1863 = vadd.f32 %v1862, %v1848
        %v1864 = vadd.f32 %v1863, %v1849
        %v1865 = vadd.f32 %v1864, %v1850
        %v1866 = vadd.f32 %v1865, %v1851
        %v1867 = vadd.f32 %v1866, %v1852
        %v1868 = vadd.f32 %v1867, %v1853
        %v1869 = vrot.slane %v1868, 4
        %v1870 = vadd.f32 %v1868, %v1869
        %v1871 = vrot.slane %v1870, 2
        %v1872 = vadd.f32 %v1870, %v1871
        %v1873 = vrot.slane %v1872, 1
        %v1874 = vadd.f32 %v1872, %v1873
        %1875 = vst [vmem:[%s230 + $0x1] sm:$0x1] %v1874
        %v1876 = vpack.c.bf16 %v1801, %v1800
        %v1877 = vpack.c.bf16 %v1803, %v1802
        %v1878 = vpack.c.bf16 %v1805, %v1804
        %v1879 = vpack.c.bf16 %v1807, %v1806
        %v1880 = vpack.c.bf16 %v1809, %v1808
        %v1881 = vpack.c.bf16 %v1811, %v1810
        %v1882 = vpack.c.bf16 %v1813, %v1812
        %v1883 = vpack.c.bf16 %v1815, %v1814
        %v1892 = vunpack.c.l.b16 %v1876
        %v1893 = vunpack.c.h.b16 %v1876
        %v1894 = vunpack.c.l.b16 %v1877
        %v1895 = vunpack.c.h.b16 %v1877
        %v1896 = vunpack.c.l.b16 %v1878
        %v1897 = vunpack.c.h.b16 %v1878
        %v1898 = vunpack.c.l.b16 %v1879
        %v1899 = vunpack.c.h.b16 %v1879
        %v1900 = vunpack.c.l.b16 %v1880
        %v1901 = vunpack.c.h.b16 %v1880
        %v1902 = vunpack.c.l.b16 %v1881
        %v1903 = vunpack.c.h.b16 %v1881
        %v1904 = vunpack.c.l.b16 %v1882
        %v1905 = vunpack.c.h.b16 %v1882
        %v1906 = vunpack.c.l.b16 %v1883
        %v1907 = vunpack.c.h.b16 %v1883
        %v1908 = vpack.c.b16 %v1892, %v1892
        %v1909 = vpack.c.b16 %v1893, %v1893
        %v1910 = vpack.c.b16 %v1894, %v1894
        %v1911 = vpack.c.b16 %v1895, %v1895
        %v1912 = vpack.c.b16 %v1896, %v1896
        %v1913 = vpack.c.b16 %v1897, %v1897
        %v1914 = vpack.c.b16 %v1898, %v1898
        %v1915 = vpack.c.b16 %v1899, %v1899
        %v1916 = vpack.c.b16 %v1900, %v1900
        %v1917 = vpack.c.b16 %v1901, %v1901
        %v1918 = vpack.c.b16 %v1902, %v1902
        %v1919 = vpack.c.b16 %v1903, %v1903
        %v1920 = vpack.c.b16 %v1904, %v1904
        %v1921 = vpack.c.b16 %v1905, %v1905
        %v1922 = vpack.c.b16 %v1906, %v1906
        %v1923 = vpack.c.b16 %v1907, %v1907
        %vm1940 = vcmask 60416
        %1941 = vst.msk [vmem:[%s223] sm:$0xf] %vm1940, %v1908
        %1942 = vst.msk [vmem:[%s223 + $0x4] sm:$0xf] %vm1940, %v1909
        %1943 = vst.msk [vmem:[%s223 + $0x8] sm:$0xf] %vm1940, %v1910
        %1944 = vst.msk [vmem:[%s223 + $0xc] sm:$0xf] %vm1940, %v1911
        %1945 = vst.msk [vmem:[%s223 + $0x10] sm:$0xf] %vm1940, %v1912
        %1946 = vst.msk [vmem:[%s223 + $0x14] sm:$0xf] %vm1940, %v1913
        %1947 = vst.msk [vmem:[%s223 + $0x18] sm:$0xf] %vm1940, %v1914
        %1948 = vst.msk [vmem:[%s223 + $0x1c] sm:$0xf] %vm1940, %v1915
        %1949 = vst.msk [vmem:[%s223 + $0x20] sm:$0xf] %vm1940, %v1916
        %1950 = vst.msk [vmem:[%s223 + $0x24] sm:$0xf] %vm1940, %v1917
        %1951 = vst.msk [vmem:[%s223 + $0x28] sm:$0xf] %vm1940, %v1918
        %1952 = vst.msk [vmem:[%s223 + $0x2c] sm:$0xf] %vm1940, %v1919
        %1953 = vst.msk [vmem:[%s223 + $0x30] sm:$0xf] %vm1940, %v1920
        %1954 = vst.msk [vmem:[%s223 + $0x34] sm:$0xf] %vm1940, %v1921
        %1955 = vst.msk [vmem:[%s223 + $0x38] sm:$0xf] %vm1940, %v1922
        %1956 = vst.msk [vmem:[%s223 + $0x3c] sm:$0xf] %vm1940, %v1923
        %s1957 = sand.u32 %s94, 1
        %s1958 = scalar_lea.sflag [#allocation4], %s1957
        %s1959 = sand.u32 %s94, 1
        %s1960 = smul.addr %s1959, 64
        %s1961 = scalar_lea.vmem [#allocation7], %s1960
        %s1962 = sand.u32 %s122, 1
        %s1963 = scalar_lea.sflag [#allocation9], %s1962
        %s1964 = sand.u32 %s122, 1
        %s1965 = smul.addr %s1964, 2
        %s1966 = scalar_lea.vmem [#allocation8], %s1965
        // Predicated region
        $region37: #{cnn_block.2} parent=27 // pred_check
          %p1967 = pneg %p104
        $region38: #{cnn_block.2} parent=27 // pred_check_branch
          %1969 = sbr.rel (%p1967) target = $region40
        $region39: #{cnn_block.2} parent=27 // pred_region
          %s1970 = smul.u32 8, %s30
          %s1972 = ssub.s32 1024, 1024
          %1973 = vsyncadd %s1958, %s1972
          %s1974 = smul.addr %s1970, 2
          %s1975 = smul.addr %s29, 32
          %s1976 = sadd.s32 %s1974, %s1975
          %s1977 = smul.addr %s1976, 64
          %s1978 = scalar_lea.hbm %s2, %s1977
          %s1979 = sshll.u32 %s1961, 4
          %s1980 = int_to_ptr.vmem [resolvable:$true] %s1979
          %1985 = dma.vmem_to_hbm [thread:$0]  %s1980, 1024, %s1978, %s1958, 64, 64, 4
        $region40: #{cnn_block.2} parent=27 // pred_fallthru
          _
        // Predicated region
        $region41: #{cnn_block.2} parent=27 // pred_check
          %p1986 = pneg %p132
        $region42: #{cnn_block.2} parent=27 // pred_check_branch
          %1988 = sbr.rel (%p1986) target = $region44
        $region43: #{cnn_block.2} parent=27 // pred_region
          %s1990 = ssub.s32 32, 32
          %1991 = vsyncadd %s1963, %s1990
          %s1992 = smul.addr %s29, 2
          %s1993 = sadd.s32 %s30, %s1992
          %s1994 = smul.addr %s1993, 32
          %s1995 = scalar_lea.hbm %s3, %s1994
          %s1997 = sshll.u32 %s1966, 4
          %s1998 = int_to_ptr.vmem [resolvable:$true] %s1997
          %2000 = dma.vmem_to_hbm [thread:$0]  %s1998, 32, %s1995, %s1963
        $region44: #{cnn_block.2} parent=27 // pred_fallthru
          _
      $region28: #{cnn_block.2} parent=5 // pred_fallthru
        _
      %p2001 = scmp.le.s32.totalorder 2, %s20
      // Predicated region
      $region45: #{cnn_block.2} parent=5 // pred_check
        %p2002 = pneg %p2001
      $region46: #{cnn_block.2} parent=5 // pred_check_branch
        %2004 = sbr.rel (%p2002) target = $region48
      $region47: #{cnn_block.2} parent=5 // pred_region
        %s2005 = ssub.s32 %s20, 2
        // Predicated region
        $region49: #{cnn_block.2} parent=47 // pred_check
          %p2006 = pneg %p110
        $region50: #{cnn_block.2} parent=47 // pred_check_branch
          %2008 = sbr.rel (%p2006) target = $region52
        $region51: #{cnn_block.2} parent=47 // pred_region
          %s2009 = sand.u32 %s95, 1
          %s2010 = scalar_lea.sflag [#allocation4], %s2009
          %s2011 = sand.u32 %s95, 1
          %s2012 = smul.addr %s2011, 64
          %s2013 = scalar_lea.vmem [#allocation7], %s2012
          %2014 = dma.done %s2010, 1024
        $region52: #{cnn_block.2} parent=47 // pred_fallthru
          _
        // Predicated region
        $region53: #{cnn_block.2} parent=47 // pred_check
          %p2015 = pneg %p138
        $region54: #{cnn_block.2} parent=47 // pred_check_branch
          %2017 = sbr.rel (%p2015) target = $region56
        $region55: #{cnn_block.2} parent=47 // pred_region
          %s2018 = sand.u32 %s123, 1
          %s2019 = scalar_lea.sflag [#allocation9], %s2018
          %s2020 = sand.u32 %s123, 1
          %s2021 = smul.addr %s2020, 2
          %s2022 = scalar_lea.vmem [#allocation8], %s2021
          %2023 = dma.done %s2019, 32
        $region56: #{cnn_block.2} parent=47 // pred_fallthru
          _
      $region48: #{cnn_block.2} parent=5 // pred_fallthru
        _
    $region6: #{cnn_block.2} parent=1 // loop_footer
      %s24 = sadd.s32 1, %s20
    $region7: #{cnn_block.2} parent=1 // loop_footer_branch
      %19 = sbr.rel target = $region3
    $region8: #{cnn_block.2} parent=1 // loop_exit
      _
    %2024 = vsyncpa [#allocation3], 1
    %s2025 = scalar_lea.sflag [#allocation3], 1
    %2026 = vsyncpa %s2025, 1
    %2027 = vsyncpa [#allocation6], 1
    %2028 = vsyncpa [#allocation4], 1
    %s2029 = scalar_lea.sflag [#allocation4], 1
    %2030 = vsyncpa %s2029, 1
    %2031 = vsyncpa [#allocation9], 1
    %s2032 = scalar_lea.sflag [#allocation9], 1
    %2033 = vsyncpa %s2032, 1

</llo_original>
